<compile_context>
chip_gen: v7x
topology: tpu7x:2x2x1
jax: 0.10.0
libtpu: 0.0.40
codegen_flags: <defaults>
</compile_context>

<pallas_src>
import functools

import numpy as np
import jax
import jax.numpy as jnp
from jax import lax
from jax.experimental import pallas as pl
from jax.experimental.pallas import tpu as pltpu


# ------------------------------- l-mul math ---------------------------------
def _l_m(mantissa_bits):
    if mantissa_bits <= 3:
        return mantissa_bits
    elif mantissa_bits == 4:
        return 3
    return 4


def _round_up(n, m):
    return ((n + m - 1) // m) * m


def _lmul_prep(v, mantissa_bits, bitcast):
    """Per-operand l-mul factors.

    Returns (mq, scale) with
      mq    = round(frexp_mantissa(v) * 2^mb) / 2^mb   (0 where v == 0)
      scale = 2^frexp_exponent(v)                      (0 where v == 0)
    so that for x, y != 0:
      lmul(x, y) == (xmq + ymq + offset) * sx * sy
    and lmul(x, y) == 0 whenever sx == 0 or sy == 0 (the torch zero-masking).
    """
    v = v.astype(jnp.float32)
    zero = v == 0.0
    bits = bitcast(v, jnp.int32)
    exp_field = jnp.bitwise_and(jnp.right_shift(bits, 23), 0xFF)
    # mantissa in [0.5, 1): rewrite the exponent field to 126 (value 0.5).
    mant_bits = bits + jnp.left_shift(126 - exp_field, 23)
    mantissa = bitcast(mant_bits, jnp.float32)
    q = float(2 ** mantissa_bits)
    mq = jnp.round(mantissa * q) * (1.0 / q)   # round-half-to-even == torch.round
    # scale = 2 ** (exp_field - 126), built directly in the exponent field.
    scale = bitcast(jnp.left_shift(exp_field + 1, 23), jnp.float32)
    mq = jnp.where(zero, 0.0, mq)
    scale = jnp.where(zero, 0.0, scale)
    return mq, scale


def _split_hi_lo(v):
    """Exact bf16 hi/lo split of f32 values carrying <= ~15 significant bits."""
    hi = v.astype(jnp.bfloat16).astype(jnp.float32)
    lo = v - hi                      # exact: few residual bits, same binade
    return hi, lo


# ------------------------------ Pallas kernel --------------------------------
def _lmul_activation_stack(v, mantissa_bits, offset):
    """Build the (M, 4K) bf16 activation stack [a_hi, a_lo, sx, sx]."""
    mq, s = _lmul_prep(v, mantissa_bits, pltpu.bitcast)
    a = (mq + offset) * s                       # <= ~11 significant bits
    a_hi, a_lo = _split_hi_lo(a)                # exact bf16 decomposition
    stack = jnp.concatenate([a_hi, a_lo, s, s], axis=-1)   # f32 concat (clean layout)
    return stack.astype(jnp.bfloat16)           # every element bf16-exact


def _lmul_mlp_kernel(x_ref, w1_ref, b1_ref, w2_ref, b2_ref, *out_refs,
                     mantissa_bits):
    offset = float(2.0 ** (-_l_m(mantissa_bits)))

    # ---- layer 1: l-mul linear + bias + ReLU (single bf16 MXU matmul) ------
    a1 = _lmul_activation_stack(x_ref[...], mantissa_bits, offset)   # (tb,4Kp)
    h = jnp.dot(a1, w1_ref[...], preferred_element_type=jnp.float32) + b1_ref[...]
    h = jnp.maximum(h, 0.0)

    # ---- layer 2: l-mul linear + bias ---------------------------------------
    a2 = _lmul_activation_stack(h, mantissa_bits, offset)            # (tb,4Hp)
    o = jnp.dot(a2, w2_ref[...], preferred_element_type=jnp.float32) + b2_ref[...]

    out_refs[0][...] = o
    if len(out_refs) > 1:        # hidden output only requested sometimes
        out_refs[1][...] = h


# ------------------------------- wrappers ------------------------------------
def prepare_lmul_weights(w_t, bias, mantissa_bits):
    """Precompute the stacked weight-side l-mul factors (once per param set).

    w_t: (in_features, out_features) = torch weight.t(); bias: (out_features,).
    Returns:
      w_stack: (4*Kp, Np) bf16 = [sy ; sy ; (ymq*sy)_hi ; (ymq*sy)_lo]
      b_pad:   (1, Np) f32
    pairing with the in-kernel activation stack [a_hi, a_lo, sx, sx] so that
      A_stack @ w_stack == ((xmq+offset)*sx) @ sy + sx @ (ymq*sy)
    with every partial product exact (power-of-two scales, exact bf16 splits).
    """
    w_t = jnp.asarray(w_t, jnp.float32)
    K, N = w_t.shape
    Kp, Np = _round_up(K, 128), _round_up(N, 128)
    w_pad = jnp.zeros((Kp, Np), jnp.float32).at[:K, :N].set(w_t)
    ymq, sy = _lmul_prep(w_pad, mantissa_bits, lax.bitcast_convert_type)
    wv = ymq * sy                                   # exact (power-of-two scale)
    w_hi, w_lo = _split_hi_lo(wv)                   # exact bf16 decomposition
    w_stack = jnp.concatenate([sy, sy, w_hi, w_lo], axis=0).astype(jnp.bfloat16)
    b_pad = jnp.zeros((1, Np), jnp.float32).at[0, :N].set(
        jnp.asarray(bias, jnp.float32))
    return w_stack, b_pad


def prepare_params(raw, mantissa_bits):
    w1, b1p = prepare_lmul_weights(raw["w1_t"], raw["b1"], mantissa_bits)
    w2, b2p = prepare_lmul_weights(raw["w2_t"], raw["b2"], mantissa_bits)
    K, H = raw["w1_t"].shape
    O = raw["w2_t"].shape[1]
    return {"w1": w1, "b1": b1p, "w2": w2, "b2": b2p, "dims": (K, H, O)}


def lmul_mlp_forward(x, params, mantissa_bits=10, return_hidden=False):
    """Full LmulMLP forward (layer1 + ReLU + layer2) in one pallas_call."""
    K, H, O = params["dims"]
    w1, b1p = params["w1"], params["b1"]
    w2, b2p = params["w2"], params["b2"]
    Kp4, Hp = w1.shape
    Hp4, Op = w2.shape
    Kp = Kp4 // 4
    assert Hp4 == 4 * Hp

    B = x.shape[0]
    assert x.shape[1] == K

    # Batch tiling: multiples of 8 sublanes; prefer >= 2 grid steps so the
    # "parallel" axis can engage both v7x TensorCores.
    B8 = _round_up(B, 8)
    tb = min(B8, 256)
    if B8 // tb < 2 and B8 >= 16:
        tb = _round_up(B8 // 2, 8)
    Bp = _round_up(B8, tb)
    x_pad = jnp.zeros((Bp, Kp), jnp.float32).at[:B, :K].set(x.astype(jnp.float32))
    grid = (Bp // tb,)

    out_shapes = [jax.ShapeDtypeStruct((Bp, Op), jnp.float32)]
    out_specs = [pl.BlockSpec((tb, Op), lambda i: (i, 0))]
    if return_hidden:
        out_shapes.append(jax.ShapeDtypeStruct((Bp, Hp), jnp.float32))
        out_specs.append(pl.BlockSpec((tb, Hp), lambda i: (i, 0)))

    # VMEM budget: weights/biases single-buffered, x/output tiles double-
    # buffered, plus in-kernel stacks + f32 temporaries; generous headroom.
    # TODO(synk): for very large layers (4*(Kp*Hp + Hp*Op)*2B beyond ~45 MiB on
    # v7x's 64 MiB/TC) the weight stacks would need a K/H reduction grid axis.
    weight_bytes = w1.size * 2 + w2.size * 2 + (b1p.size + b2p.size) * 4
    io_bytes = 2 * (tb * Kp * 4 + tb * Op * 4 + (tb * Hp * 4 if return_hidden else 0))
    tmp_bytes = tb * (4 * Kp + 4 * Hp) * 2 + 4 * tb * (Kp + Hp) * 4
    vmem_limit = int(max(
        32 << 20,
        min(int((weight_bytes + io_bytes + tmp_bytes) * 1.5) + (8 << 20), 120 << 20)))

    cost = pl.CostEstimate(
        flops=int(2 * Bp * (4 * Kp) * Hp + 2 * Bp * (4 * Hp) * Op),
        transcendentals=0,
        bytes_accessed=int(x_pad.size * 4 + w1.size * 2 + w2.size * 2
                           + (b1p.size + b2p.size) * 4
                           + sum(int(np.prod(s.shape)) * 4 for s in out_shapes)))

    kernel = functools.partial(_lmul_mlp_kernel, mantissa_bits=mantissa_bits)

    def _build(single_buffer_weights):
        wmode = ({"pipeline_mode": pl.Buffered(1)}
                 if single_buffer_weights else {})
        in_specs = [
            pl.BlockSpec((tb, Kp), lambda i: (i, 0)),                # x tile
            pl.BlockSpec((4 * Kp, Hp), lambda i: (0, 0), **wmode),   # layer1 stack
            pl.BlockSpec((1, Hp), lambda i: (0, 0), **wmode),        # bias1
            pl.BlockSpec((4 * Hp, Op), lambda i: (0, 0), **wmode),   # layer2 stack
            pl.BlockSpec((1, Op), lambda i: (0, 0), **wmode),        # bias2
        ]
        return pl.pallas_call(
            kernel,
            out_shape=tuple(out_shapes),
            grid=grid,
            in_specs=in_specs,
            out_specs=tuple(out_specs),
            compiler_params=pltpu.CompilerParams(
                dimension_semantics=("parallel",),   # v7x: split batch over TCs
                vmem_limit_bytes=vmem_limit),
            cost_estimate=cost,
        )

    try:
        outs = _build(True)(x_pad, w1, b1p, w2, b2p)
        outs = jax.block_until_ready(outs)
    except Exception:
        # Single-buffered (Buffered(1)) weights not supported by this JAX
        # build -> fall back to default double-buffering.
        outs = _build(False)(x_pad, w1, b1p, w2, b2p)

    if return_hidden:
        o_pad, h_pad = outs
        return o_pad[:B, :O], h_pad[:B, :H]
    (o_pad,) = outs
    return o_pad[:B, :O]


# ---------------------- pure-JAX reference (torch semantics) -----------------
def _frexp_ref(x, bitcast):
    bits = bitcast(x, jnp.int32)
    exp_field = jnp.bitwise_and(jnp.right_shift(bits, 23), 0xFF)
    exponent = exp_field - 126
    mant_bits = bits + jnp.left_shift(126 - exp_field, 23)
    return bitcast(mant_bits, jnp.float32), exponent


def _ldexp_ref(m, e, bitcast):
    e1 = e // 2
    e2 = e - e1
    s1 = bitcast(jnp.left_shift(e1 + 127, 23), jnp.float32)
    s2 = bitcast(jnp.left_shift(e2 + 127, 23), jnp.float32)
    return m * s1 * s2


def lmul_approx_ref(x, y, mantissa_bits):
    """Elementwise reference of torch lmul_approximation (normal inputs)."""
    bc = lax.bitcast_convert_type
    x = x.astype(jnp.float32)
    y = y.astype(jnp.float32)
    xz, yz = x == 0.0, y == 0.0
    xm, xe = _frexp_ref(x, bc)
    ym, ye = _frexp_ref(y, bc)
    xm = jnp.where(xz, 0.0, xm); xe = jnp.where(xz, 0, xe)
    ym = jnp.where(yz, 0.0, ym); ye = jnp.where(yz, 0, ye)
    q = float(2 ** mantissa_bits)
    xmq = jnp.round(xm * q) / q
    ymq = jnp.round(ym * q) / q
    offset = 2.0 ** (-_l_m(mantissa_bits))
    res = _ldexp_ref(xmq + ymq + offset, xe + ye, bc)
    return jnp.where(jnp.logical_or(xz, yz), 0.0, res)


def lmul_matmul_ref(x, w_t, mantissa_bits):
    prod = lmul_approx_ref(x[:, :, None], w_t[None, :, :], mantissa_bits)
    return jnp.sum(prod, axis=1)


# --------------------------------- params ------------------------------------
def init_raw_params(key, input_size, hidden_size, output_size):
    k1, k2, k3, k4 = jax.random.split(key, 4)
    bound1 = 1.0 / float(np.sqrt(input_size))   # kaiming_uniform(a=sqrt(5)) bound
    w1 = jax.random.uniform(k1, (hidden_size, input_size), jnp.float32, -bound1, bound1)
    b1 = jax.random.uniform(k2, (hidden_size,), jnp.float32, -bound1, bound1)
    bound2 = 1.0 / float(np.sqrt(hidden_size))
    w2 = jax.random.uniform(k3, (output_size, hidden_size), jnp.float32, -bound2, bound2)
    b2 = jax.random.uniform(k4, (output_size,), jnp.float32, -bound2, bound2)
    return {"w1_t": w1.T, "b1": b1, "w2_t": w2.T, "b2": b2}


# ----------------------------------- main -------------------------------------
if __name__ == "__main__":
    batch, input_size, hidden_size, output_size = 8, 16, 32, 8
    mantissa_bits = 10

    key = jax.random.PRNGKey(0)
    kx, kp = jax.random.split(key)
    x = jax.random.normal(kx, (batch, input_size), jnp.float32)
    raw = init_raw_params(kp, input_size, hidden_size, output_size)
    params = prepare_params(raw, mantissa_bits)

    # Verification path (also writes the hidden activation back to HBM).
    out, h_pal = lmul_mlp_forward(x, params, mantissa_bits, return_hidden=True)
    out = jax.block_until_ready(out)
    h_pal = jax.block_until_ready(h_pal)

    # Lean production path: hidden stays in VMEM/registers, single output.
    out_lean = jax.block_until_ready(
        lmul_mlp_forward(x, params, mantissa_bits, return_hidden=False))

    # Layer-by-layer check against the torch-equivalent elementwise reference.
    # All partial products in the kernel are exact; the only deviation is MXU
    # f32 accumulation order vs. the reference's VPU sum.
    h_ref = jnp.maximum(
        lmul_matmul_ref(x, raw["w1_t"], mantissa_bits) + raw["b1"], 0.0)
    out_ref = lmul_matmul_ref(h_pal, raw["w2_t"], mantissa_bits) + raw["b2"]
    np.testing.assert_allclose(np.asarray(h_pal), np.asarray(h_ref),
                               rtol=2e-5, atol=2e-5)
    np.testing.assert_allclose(np.asarray(out), np.asarray(out_ref),
                               rtol=2e-5, atol=2e-5)
    np.testing.assert_allclose(np.asarray(out_lean), np.asarray(out),
                               rtol=1e-5, atol=1e-5)

    # TODO(synk): LmulFunction.backward (custom autograd) is out of scope; only
    # the forward pass is implemented.
    print("KERNEL_OK")
</pallas_src>

<mosaic_0001>
module attributes {stable_mosaic.version = 11 : i64} {
  func.func @_lmul_mlp_kernel(%arg0: i32, %arg1: memref<8x128xf32, #tpu.memory_space<vmem>>, %arg2: memref<512x128xbf16, #tpu.memory_space<vmem>>, %arg3: memref<1x128xf32, #tpu.memory_space<vmem>>, %arg4: memref<512x128xbf16, #tpu.memory_space<vmem>>, %arg5: memref<1x128xf32, #tpu.memory_space<vmem>>, %arg6: memref<8x128xf32, #tpu.memory_space<vmem>>, %arg7: memref<8x128xf32, #tpu.memory_space<vmem>>) attributes {dimension_semantics = [#tpu.dimension_semantics<parallel>], iteration_bounds = array<i64: 1>, scalar_prefetch = 0 : i64, scratch_operands = 0 : i64, tpu.core_type = #tpu.core_type<tc>, window_params = [{transform_indices = @transform_0, window_bounds = array<i64: 8, 128>}, {pipeline_mode = #tpu.pipeline_mode<synchronous>, transform_indices = @transform_1, window_bounds = array<i64: 512, 128>}, {pipeline_mode = #tpu.pipeline_mode<synchronous>, transform_indices = @transform_2, window_bounds = array<i64: 1, 128>}, {pipeline_mode = #tpu.pipeline_mode<synchronous>, transform_indices = @transform_3, window_bounds = array<i64: 512, 128>}, {pipeline_mode = #tpu.pipeline_mode<synchronous>, transform_indices = @transform_4, window_bounds = array<i64: 1, 128>}, {transform_indices = @transform_5, window_bounds = array<i64: 8, 128>}, {transform_indices = @transform_6, window_bounds = array<i64: 8, 128>}]} {
    %c0 = arith.constant 0 : index
    %c0_0 = arith.constant 0 : index
    %0 = vector.load %arg1[%c0, %c0_0] : memref<8x128xf32, #tpu.memory_space<vmem>>, vector<8x128xf32>
    %cst = arith.constant 0.000000e+00 : f32
    %1 = vector.broadcast %cst : f32 to vector<8x128xf32>
    %2 = arith.cmpf oeq, %0, %1 : vector<8x128xf32>
    %3 = tpu.bitcast %0 : vector<8x128xf32> -> vector<8x128xi32>
    %c23_i32 = arith.constant 23 : i32
    %4 = vector.broadcast %c23_i32 : i32 to vector<8x128xi32>
    %5 = arith.shrsi %3, %4 : vector<8x128xi32>
    %c255_i32 = arith.constant 255 : i32
    %6 = vector.broadcast %c255_i32 : i32 to vector<8x128xi32>
    %7 = arith.andi %5, %6 : vector<8x128xi32>
    %c126_i32 = arith.constant 126 : i32
    %8 = vector.broadcast %c126_i32 : i32 to vector<8x128xi32>
    %9 = arith.subi %8, %7 : vector<8x128xi32>
    %c23_i32_1 = arith.constant 23 : i32
    %10 = vector.broadcast %c23_i32_1 : i32 to vector<8x128xi32>
    %11 = arith.shli %9, %10 : vector<8x128xi32>
    %12 = arith.addi %3, %11 : vector<8x128xi32>
    %13 = tpu.bitcast %12 : vector<8x128xi32> -> vector<8x128xf32>
    %cst_2 = arith.constant 1.024000e+03 : f32
    %14 = vector.broadcast %cst_2 : f32 to vector<8x128xf32>
    %15 = arith.mulf %13, %14 : vector<8x128xf32>
    %16 = math.roundeven %15 : vector<8x128xf32>
    %cst_3 = arith.constant 9.765625E-4 : f32
    %17 = vector.broadcast %cst_3 : f32 to vector<8x128xf32>
    %18 = arith.mulf %16, %17 : vector<8x128xf32>
    %c1_i32 = arith.constant 1 : i32
    %19 = vector.broadcast %c1_i32 : i32 to vector<8x128xi32>
    %20 = arith.addi %7, %19 : vector<8x128xi32>
    %c23_i32_4 = arith.constant 23 : i32
    %21 = vector.broadcast %c23_i32_4 : i32 to vector<8x128xi32>
    %22 = arith.shli %20, %21 : vector<8x128xi32>
    %23 = tpu.bitcast %22 : vector<8x128xi32> -> vector<8x128xf32>
    %cst_5 = arith.constant 0.000000e+00 : f32
    %24 = vector.broadcast %cst_5 : f32 to vector<8x128xf32>
    %25 = arith.select %2, %24, %18 : vector<8x128xi1>, vector<8x128xf32>
    %cst_6 = arith.constant 0.000000e+00 : f32
    %26 = vector.broadcast %cst_6 : f32 to vector<8x128xf32>
    %27 = arith.select %2, %26, %23 : vector<8x128xi1>, vector<8x128xf32>
    %cst_7 = arith.constant 6.250000e-02 : f32
    %28 = vector.broadcast %cst_7 : f32 to vector<8x128xf32>
    %29 = arith.addf %25, %28 : vector<8x128xf32>
    %30 = arith.mulf %29, %27 : vector<8x128xf32>
    %31 = arith.truncf %30 : vector<8x128xf32> to vector<8x128xbf16>
    %32 = arith.extf %31 : vector<8x128xbf16> to vector<8x128xf32>
    %33 = arith.subf %30, %32 : vector<8x128xf32>
    %34 = tpu.concatenate %32, %33, %27, %27 in 1 : vector<8x128xf32>, vector<8x128xf32>, vector<8x128xf32>, vector<8x128xf32> -> vector<8x512xf32>
    %35 = arith.truncf %34 : vector<8x512xf32> to vector<8x512xbf16>
    %c0_8 = arith.constant 0 : index
    %c0_9 = arith.constant 0 : index
    %36 = vector.load %arg2[%c0_8, %c0_9] : memref<512x128xbf16, #tpu.memory_space<vmem>>, vector<512x128xbf16>
    %cst_10 = arith.constant dense<0.000000e+00> : vector<8x128xf32>
    %37 = tpu.matmul %35, %36, %cst_10 {dimension_numbers = #tpu.dot_dimension_numbers<[1], [0], [0], [1], [0, 0, 1, 1], [], []>} : vector<8x512xbf16>, vector<512x128xbf16>, vector<8x128xf32> -> vector<8x128xf32>
    %c0_11 = arith.constant 0 : index
    %c0_12 = arith.constant 0 : index
    %38 = vector.load %arg3[%c0_11, %c0_12] : memref<1x128xf32, #tpu.memory_space<vmem>>, vector<1x128xf32>
    %39 = vector.broadcast %38 : vector<1x128xf32> to vector<8x128xf32>
    %40 = arith.addf %37, %39 : vector<8x128xf32>
    %cst_13 = arith.constant 0.000000e+00 : f32
    %41 = vector.broadcast %cst_13 : f32 to vector<8x128xf32>
    %42 = arith.maximumf %40, %41 : vector<8x128xf32>
    %cst_14 = arith.constant 0.000000e+00 : f32
    %43 = vector.broadcast %cst_14 : f32 to vector<8x128xf32>
    %44 = arith.cmpf oeq, %42, %43 : vector<8x128xf32>
    %45 = tpu.bitcast %42 : vector<8x128xf32> -> vector<8x128xi32>
    %c23_i32_15 = arith.constant 23 : i32
    %46 = vector.broadcast %c23_i32_15 : i32 to vector<8x128xi32>
    %47 = arith.shrsi %45, %46 : vector<8x128xi32>
    %c255_i32_16 = arith.constant 255 : i32
    %48 = vector.broadcast %c255_i32_16 : i32 to vector<8x128xi32>
    %49 = arith.andi %47, %48 : vector<8x128xi32>
    %c126_i32_17 = arith.constant 126 : i32
    %50 = vector.broadcast %c126_i32_17 : i32 to vector<8x128xi32>
    %51 = arith.subi %50, %49 : vector<8x128xi32>
    %c23_i32_18 = arith.constant 23 : i32
    %52 = vector.broadcast %c23_i32_18 : i32 to vector<8x128xi32>
    %53 = arith.shli %51, %52 : vector<8x128xi32>
    %54 = arith.addi %45, %53 : vector<8x128xi32>
    %55 = tpu.bitcast %54 : vector<8x128xi32> -> vector<8x128xf32>
    %cst_19 = arith.constant 1.024000e+03 : f32
    %56 = vector.broadcast %cst_19 : f32 to vector<8x128xf32>
    %57 = arith.mulf %55, %56 : vector<8x128xf32>
    %58 = math.roundeven %57 : vector<8x128xf32>
    %cst_20 = arith.constant 9.765625E-4 : f32
    %59 = vector.broadcast %cst_20 : f32 to vector<8x128xf32>
    %60 = arith.mulf %58, %59 : vector<8x128xf32>
    %c1_i32_21 = arith.constant 1 : i32
    %61 = vector.broadcast %c1_i32_21 : i32 to vector<8x128xi32>
    %62 = arith.addi %49, %61 : vector<8x128xi32>
    %c23_i32_22 = arith.constant 23 : i32
    %63 = vector.broadcast %c23_i32_22 : i32 to vector<8x128xi32>
    %64 = arith.shli %62, %63 : vector<8x128xi32>
    %65 = tpu.bitcast %64 : vector<8x128xi32> -> vector<8x128xf32>
    %cst_23 = arith.constant 0.000000e+00 : f32
    %66 = vector.broadcast %cst_23 : f32 to vector<8x128xf32>
    %67 = arith.select %44, %66, %60 : vector<8x128xi1>, vector<8x128xf32>
    %cst_24 = arith.constant 0.000000e+00 : f32
    %68 = vector.broadcast %cst_24 : f32 to vector<8x128xf32>
    %69 = arith.select %44, %68, %65 : vector<8x128xi1>, vector<8x128xf32>
    %cst_25 = arith.constant 6.250000e-02 : f32
    %70 = vector.broadcast %cst_25 : f32 to vector<8x128xf32>
    %71 = arith.addf %67, %70 : vector<8x128xf32>
    %72 = arith.mulf %71, %69 : vector<8x128xf32>
    %73 = arith.truncf %72 : vector<8x128xf32> to vector<8x128xbf16>
    %74 = arith.extf %73 : vector<8x128xbf16> to vector<8x128xf32>
    %75 = arith.subf %72, %74 : vector<8x128xf32>
    %76 = tpu.concatenate %74, %75, %69, %69 in 1 : vector<8x128xf32>, vector<8x128xf32>, vector<8x128xf32>, vector<8x128xf32> -> vector<8x512xf32>
    %77 = arith.truncf %76 : vector<8x512xf32> to vector<8x512xbf16>
    %c0_26 = arith.constant 0 : index
    %c0_27 = arith.constant 0 : index
    %78 = vector.load %arg4[%c0_26, %c0_27] : memref<512x128xbf16, #tpu.memory_space<vmem>>, vector<512x128xbf16>
    %cst_28 = arith.constant dense<0.000000e+00> : vector<8x128xf32>
    %79 = tpu.matmul %77, %78, %cst_28 {dimension_numbers = #tpu.dot_dimension_numbers<[1], [0], [0], [1], [0, 0, 1, 1], [], []>} : vector<8x512xbf16>, vector<512x128xbf16>, vector<8x128xf32> -> vector<8x128xf32>
    %c0_29 = arith.constant 0 : index
    %c0_30 = arith.constant 0 : index
    %80 = vector.load %arg5[%c0_29, %c0_30] : memref<1x128xf32, #tpu.memory_space<vmem>>, vector<1x128xf32>
    %81 = vector.broadcast %80 : vector<1x128xf32> to vector<8x128xf32>
    %82 = arith.addf %79, %81 : vector<8x128xf32>
    %c0_31 = arith.constant 0 : index
    %c0_32 = arith.constant 0 : index
    %83 = vector.load %arg6[%c0_31, %c0_32] : memref<8x128xf32, #tpu.memory_space<vmem>>, vector<8x128xf32>
    tpu.vector_store %arg6[%c0_31, %c0_32], %82 {strides = array<i32>} : memref<8x128xf32, #tpu.memory_space<vmem>>, vector<8x128xf32>,
    %c0_33 = arith.constant 0 : index
    %c0_34 = arith.constant 0 : index
    %84 = vector.load %arg7[%c0_33, %c0_34] : memref<8x128xf32, #tpu.memory_space<vmem>>, vector<8x128xf32>
    tpu.vector_store %arg7[%c0_33, %c0_34], %42 {strides = array<i32>} : memref<8x128xf32, #tpu.memory_space<vmem>>, vector<8x128xf32>,
    return
  }
  func.func @transform_0(%arg0: i32) -> (i32, i32) {
    %c0_i32 = arith.constant 0 : i32
    %c0_i32_0 = arith.constant 0 : i32
    return %arg0, %c0_i32 : i32, i32
  }
  func.func @transform_1(%arg0: i32) -> (i32, i32) {
    %c0_i32 = arith.constant 0 : i32
    %c0_i32_0 = arith.constant 0 : i32
    %c0_i32_1 = arith.constant 0 : i32
    return %c0_i32, %c0_i32_0 : i32, i32
  }
  func.func @transform_2(%arg0: i32) -> (i32, i32) {
    %c0_i32 = arith.constant 0 : i32
    %c0_i32_0 = arith.constant 0 : i32
    %c0_i32_1 = arith.constant 0 : i32
    return %c0_i32, %c0_i32_0 : i32, i32
  }
  func.func @transform_3(%arg0: i32) -> (i32, i32) {
    %c0_i32 = arith.constant 0 : i32
    %c0_i32_0 = arith.constant 0 : i32
    %c0_i32_1 = arith.constant 0 : i32
    return %c0_i32, %c0_i32_0 : i32, i32
  }
  func.func @transform_4(%arg0: i32) -> (i32, i32) {
    %c0_i32 = arith.constant 0 : i32
    %c0_i32_0 = arith.constant 0 : i32
    %c0_i32_1 = arith.constant 0 : i32
    return %c0_i32, %c0_i32_0 : i32, i32
  }
  func.func @transform_5(%arg0: i32) -> (i32, i32) {
    %c0_i32 = arith.constant 0 : i32
    %c0_i32_0 = arith.constant 0 : i32
    return %arg0, %c0_i32 : i32, i32
  }
  func.func @transform_6(%arg0: i32) -> (i32, i32) {
    %c0_i32 = arith.constant 0 : i32
    %c0_i32_0 = arith.constant 0 : i32
    return %arg0, %c0_i32 : i32, i32
  }
}

module attributes {stable_mosaic.version = 11 : i64} {
  func.func @_lmul_mlp_kernel(%arg0: i32, %arg1: memref<8x128xf32, #tpu.memory_space<vmem>>, %arg2: memref<512x128xbf16, #tpu.memory_space<vmem>>, %arg3: memref<1x128xf32, #tpu.memory_space<vmem>>, %arg4: memref<512x128xbf16, #tpu.memory_space<vmem>>, %arg5: memref<1x128xf32, #tpu.memory_space<vmem>>, %arg6: memref<8x128xf32, #tpu.memory_space<vmem>>, %arg7: memref<8x128xf32, #tpu.memory_space<vmem>>) attributes {dimension_semantics = [#tpu.dimension_semantics<parallel>], iteration_bounds = array<i64: 1>, scalar_prefetch = 0 : i64, scratch_operands = 0 : i64, tpu.core_type = #tpu.core_type<tc>, window_params = [{transform_indices = @transform_0, window_bounds = array<i64: 8, 128>}, {pipeline_mode = #tpu.pipeline_mode<synchronous>, transform_indices = @transform_1, window_bounds = array<i64: 512, 128>}, {pipeline_mode = #tpu.pipeline_mode<synchronous>, transform_indices = @transform_2, window_bounds = array<i64: 1, 128>}, {pipeline_mode = #tpu.pipeline_mode<synchronous>, transform_indices = @transform_3, window_bounds = array<i64: 512, 128>}, {pipeline_mode = #tpu.pipeline_mode<synchronous>, transform_indices = @transform_4, window_bounds = array<i64: 1, 128>}, {transform_indices = @transform_5, window_bounds = array<i64: 8, 128>}, {transform_indices = @transform_6, window_bounds = array<i64: 8, 128>}]} {
    %c0 = arith.constant 0 : index
    %c0_0 = arith.constant 0 : index
    %0 = vector.load %arg1[%c0, %c0_0] : memref<8x128xf32, #tpu.memory_space<vmem>>, vector<8x128xf32>
    %cst = arith.constant 0.000000e+00 : f32
    %1 = vector.broadcast %cst : f32 to vector<8x128xf32>
    %2 = arith.cmpf oeq, %0, %1 : vector<8x128xf32>
    %3 = tpu.bitcast %0 : vector<8x128xf32> -> vector<8x128xi32>
    %c23_i32 = arith.constant 23 : i32
    %4 = vector.broadcast %c23_i32 : i32 to vector<8x128xi32>
    %5 = arith.shrsi %3, %4 : vector<8x128xi32>
    %c255_i32 = arith.constant 255 : i32
    %6 = vector.broadcast %c255_i32 : i32 to vector<8x128xi32>
    %7 = arith.andi %5, %6 : vector<8x128xi32>
    %c126_i32 = arith.constant 126 : i32
    %8 = vector.broadcast %c126_i32 : i32 to vector<8x128xi32>
    %9 = arith.subi %8, %7 : vector<8x128xi32>
    %c23_i32_1 = arith.constant 23 : i32
    %10 = vector.broadcast %c23_i32_1 : i32 to vector<8x128xi32>
    %11 = arith.shli %9, %10 : vector<8x128xi32>
    %12 = arith.addi %3, %11 : vector<8x128xi32>
    %13 = tpu.bitcast %12 : vector<8x128xi32> -> vector<8x128xf32>
    %cst_2 = arith.constant 1.024000e+03 : f32
    %14 = vector.broadcast %cst_2 : f32 to vector<8x128xf32>
    %15 = arith.mulf %13, %14 : vector<8x128xf32>
    %16 = math.roundeven %15 : vector<8x128xf32>
    %cst_3 = arith.constant 9.765625E-4 : f32
    %17 = vector.broadcast %cst_3 : f32 to vector<8x128xf32>
    %18 = arith.mulf %16, %17 : vector<8x128xf32>
    %c1_i32 = arith.constant 1 : i32
    %19 = vector.broadcast %c1_i32 : i32 to vector<8x128xi32>
    %20 = arith.addi %7, %19 : vector<8x128xi32>
    %c23_i32_4 = arith.constant 23 : i32
    %21 = vector.broadcast %c23_i32_4 : i32 to vector<8x128xi32>
    %22 = arith.shli %20, %21 : vector<8x128xi32>
    %23 = tpu.bitcast %22 : vector<8x128xi32> -> vector<8x128xf32>
    %cst_5 = arith.constant 0.000000e+00 : f32
    %24 = vector.broadcast %cst_5 : f32 to vector<8x128xf32>
    %25 = arith.select %2, %24, %18 : vector<8x128xi1>, vector<8x128xf32>
    %cst_6 = arith.constant 0.000000e+00 : f32
    %26 = vector.broadcast %cst_6 : f32 to vector<8x128xf32>
    %27 = arith.select %2, %26, %23 : vector<8x128xi1>, vector<8x128xf32>
    %cst_7 = arith.constant 6.250000e-02 : f32
    %28 = vector.broadcast %cst_7 : f32 to vector<8x128xf32>
    %29 = arith.addf %25, %28 : vector<8x128xf32>
    %30 = arith.mulf %29, %27 : vector<8x128xf32>
    %31 = arith.truncf %30 : vector<8x128xf32> to vector<8x128xbf16>
    %32 = arith.extf %31 : vector<8x128xbf16> to vector<8x128xf32>
    %33 = arith.subf %30, %32 : vector<8x128xf32>
    %34 = tpu.concatenate %32, %33, %27, %27 in 1 : vector<8x128xf32>, vector<8x128xf32>, vector<8x128xf32>, vector<8x128xf32> -> vector<8x512xf32>
    %35 = arith.truncf %34 : vector<8x512xf32> to vector<8x512xbf16>
    %c0_8 = arith.constant 0 : index
    %c0_9 = arith.constant 0 : index
    %36 = vector.load %arg2[%c0_8, %c0_9] : memref<512x128xbf16, #tpu.memory_space<vmem>>, vector<512x128xbf16>
    %cst_10 = arith.constant dense<0.000000e+00> : vector<8x128xf32>
    %37 = tpu.matmul %35, %36, %cst_10 {dimension_numbers = #tpu.dot_dimension_numbers<[1], [0], [0], [1], [0, 0, 1, 1], [], []>} : vector<8x512xbf16>, vector<512x128xbf16>, vector<8x128xf32> -> vector<8x128xf32>
    %c0_11 = arith.constant 0 : index
    %c0_12 = arith.constant 0 : index
    %38 = vector.load %arg3[%c0_11, %c0_12] : memref<1x128xf32, #tpu.memory_space<vmem>>, vector<1x128xf32>
    %39 = vector.broadcast %38 : vector<1x128xf32> to vector<8x128xf32>
    %40 = arith.addf %37, %39 : vector<8x128xf32>
    %cst_13 = arith.constant 0.000000e+00 : f32
    %41 = vector.broadcast %cst_13 : f32 to vector<8x128xf32>
    %42 = arith.maximumf %40, %41 : vector<8x128xf32>
    %cst_14 = arith.constant 0.000000e+00 : f32
    %43 = vector.broadcast %cst_14 : f32 to vector<8x128xf32>
    %44 = arith.cmpf oeq, %42, %43 : vector<8x128xf32>
    %45 = tpu.bitcast %42 : vector<8x128xf32> -> vector<8x128xi32>
    %c23_i32_15 = arith.constant 23 : i32
    %46 = vector.broadcast %c23_i32_15 : i32 to vector<8x128xi32>
    %47 = arith.shrsi %45, %46 : vector<8x128xi32>
    %c255_i32_16 = arith.constant 255 : i32
    %48 = vector.broadcast %c255_i32_16 : i32 to vector<8x128xi32>
    %49 = arith.andi %47, %48 : vector<8x128xi32>
    %c126_i32_17 = arith.constant 126 : i32
    %50 = vector.broadcast %c126_i32_17 : i32 to vector<8x128xi32>
    %51 = arith.subi %50, %49 : vector<8x128xi32>
    %c23_i32_18 = arith.constant 23 : i32
    %52 = vector.broadcast %c23_i32_18 : i32 to vector<8x128xi32>
    %53 = arith.shli %51, %52 : vector<8x128xi32>
    %54 = arith.addi %45, %53 : vector<8x128xi32>
    %55 = tpu.bitcast %54 : vector<8x128xi32> -> vector<8x128xf32>
    %cst_19 = arith.constant 1.024000e+03 : f32
    %56 = vector.broadcast %cst_19 : f32 to vector<8x128xf32>
    %57 = arith.mulf %55, %56 : vector<8x128xf32>
    %58 = math.roundeven %57 : vector<8x128xf32>
    %cst_20 = arith.constant 9.765625E-4 : f32
    %59 = vector.broadcast %cst_20 : f32 to vector<8x128xf32>
    %60 = arith.mulf %58, %59 : vector<8x128xf32>
    %c1_i32_21 = arith.constant 1 : i32
    %61 = vector.broadcast %c1_i32_21 : i32 to vector<8x128xi32>
    %62 = arith.addi %49, %61 : vector<8x128xi32>
    %c23_i32_22 = arith.constant 23 : i32
    %63 = vector.broadcast %c23_i32_22 : i32 to vector<8x128xi32>
    %64 = arith.shli %62, %63 : vector<8x128xi32>
    %65 = tpu.bitcast %64 : vector<8x128xi32> -> vector<8x128xf32>
    %cst_23 = arith.constant 0.000000e+00 : f32
    %66 = vector.broadcast %cst_23 : f32 to vector<8x128xf32>
    %67 = arith.select %44, %66, %60 : vector<8x128xi1>, vector<8x128xf32>
    %cst_24 = arith.constant 0.000000e+00 : f32
    %68 = vector.broadcast %cst_24 : f32 to vector<8x128xf32>
    %69 = arith.select %44, %68, %65 : vector<8x128xi1>, vector<8x128xf32>
    %cst_25 = arith.constant 6.250000e-02 : f32
    %70 = vector.broadcast %cst_25 : f32 to vector<8x128xf32>
    %71 = arith.addf %67, %70 : vector<8x128xf32>
    %72 = arith.mulf %71, %69 : vector<8x128xf32>
    %73 = arith.truncf %72 : vector<8x128xf32> to vector<8x128xbf16>
    %74 = arith.extf %73 : vector<8x128xbf16> to vector<8x128xf32>
    %75 = arith.subf %72, %74 : vector<8x128xf32>
    %76 = tpu.concatenate %74, %75, %69, %69 in 1 : vector<8x128xf32>, vector<8x128xf32>, vector<8x128xf32>, vector<8x128xf32> -> vector<8x512xf32>
    %77 = arith.truncf %76 : vector<8x512xf32> to vector<8x512xbf16>
    %c0_26 = arith.constant 0 : index
    %c0_27 = arith.constant 0 : index
    %78 = vector.load %arg4[%c0_26, %c0_27] : memref<512x128xbf16, #tpu.memory_space<vmem>>, vector<512x128xbf16>
    %cst_28 = arith.constant dense<0.000000e+00> : vector<8x128xf32>
    %79 = tpu.matmul %77, %78, %cst_28 {dimension_numbers = #tpu.dot_dimension_numbers<[1], [0], [0], [1], [0, 0, 1, 1], [], []>} : vector<8x512xbf16>, vector<512x128xbf16>, vector<8x128xf32> -> vector<8x128xf32>
    %c0_29 = arith.constant 0 : index
    %c0_30 = arith.constant 0 : index
    %80 = vector.load %arg5[%c0_29, %c0_30] : memref<1x128xf32, #tpu.memory_space<vmem>>, vector<1x128xf32>
    %81 = vector.broadcast %80 : vector<1x128xf32> to vector<8x128xf32>
    %82 = arith.addf %79, %81 : vector<8x128xf32>
    %c0_31 = arith.constant 0 : index
    %c0_32 = arith.constant 0 : index
    %83 = vector.load %arg6[%c0_31, %c0_32] : memref<8x128xf32, #tpu.memory_space<vmem>>, vector<8x128xf32>
    tpu.vector_store %arg6[%c0_31, %c0_32], %82 {strides = array<i32>} : memref<8x128xf32, #tpu.memory_space<vmem>>, vector<8x128xf32>,
    %c0_33 = arith.constant 0 : index
    %c0_34 = arith.constant 0 : index
    %84 = vector.load %arg7[%c0_33, %c0_34] : memref<8x128xf32, #tpu.memory_space<vmem>>, vector<8x128xf32>
    tpu.vector_store %arg7[%c0_33, %c0_34], %42 {strides = array<i32>} : memref<8x128xf32, #tpu.memory_space<vmem>>, vector<8x128xf32>,
    return
  }
  func.func @transform_0(%arg0: i32) -> (i32, i32) {
    %c0_i32 = arith.constant 0 : i32
    %c0_i32_0 = arith.constant 0 : i32
    return %arg0, %c0_i32 : i32, i32
  }
  func.func @transform_1(%arg0: i32) -> (i32, i32) {
    %c0_i32 = arith.constant 0 : i32
    %c0_i32_0 = arith.constant 0 : i32
    %c0_i32_1 = arith.constant 0 : i32
    return %c0_i32, %c0_i32_0 : i32, i32
  }
  func.func @transform_2(%arg0: i32) -> (i32, i32) {
    %c0_i32 = arith.constant 0 : i32
    %c0_i32_0 = arith.constant 0 : i32
    %c0_i32_1 = arith.constant 0 : i32
    return %c0_i32, %c0_i32_0 : i32, i32
  }
  func.func @transform_3(%arg0: i32) -> (i32, i32) {
    %c0_i32 = arith.constant 0 : i32
    %c0_i32_0 = arith.constant 0 : i32
    %c0_i32_1 = arith.constant 0 : i32
    return %c0_i32, %c0_i32_0 : i32, i32
  }
  func.func @transform_4(%arg0: i32) -> (i32, i32) {
    %c0_i32 = arith.constant 0 : i32
    %c0_i32_0 = arith.constant 0 : i32
    %c0_i32_1 = arith.constant 0 : i32
    return %c0_i32, %c0_i32_0 : i32, i32
  }
  func.func @transform_5(%arg0: i32) -> (i32, i32) {
    %c0_i32 = arith.constant 0 : i32
    %c0_i32_0 = arith.constant 0 : i32
    return %arg0, %c0_i32 : i32, i32
  }
  func.func @transform_6(%arg0: i32) -> (i32, i32) {
    %c0_i32 = arith.constant 0 : i32
    %c0_i32_0 = arith.constant 0 : i32
    return %arg0, %c0_i32 : i32, i32
  }
}

</mosaic_0001>

<llo_original>
// kernel: tpu_custom_call.1
$region0: #{tpu_custom_call.1}
  #allocation0 [shape = 'u32[]', space=smem, size = 0x4, offset = 0x4, fixed_abs, tag = 'smem constant byte address 0x4 - core index']
  #allocation1 [shape = 'u32[144,128]{1,0:T(1,128)}', space=vmem, size = 0x12000, scoped, tag = 'internal scratch']
  %s0 = inlined_call_operand.hbm [shape: f32[8,128], index: 0, kind: input, shape index: {}]
  %s1 = inlined_call_operand.hbm [shape: bf16[512,128], index: 1, kind: input, shape index: {}]
  %s2 = inlined_call_operand.vmem [shape: f32[1,128], index: 2, kind: input, shape index: {}]
  %s3 = inlined_call_operand.hbm [shape: bf16[512,128], index: 3, kind: input, shape index: {}]
  %s4 = inlined_call_operand.vmem [shape: f32[1,128], index: 4, kind: input, shape index: {}]
  %s5 = inlined_call_operand.hbm [shape: f32[8,128], index: 5, kind: output, shape index: {0}]
  %s6 = inlined_call_operand.hbm [shape: f32[8,128], index: 6, kind: output, shape index: {1}]
  %7 = xla_tuple %s5, %s6
  %s8 = sld [smem:[#allocation0]]
  $region50: #{tpu_custom_call.1} parent=0
    _
  %s10 = ssub.s32 1, %s8
  %s11 = scalar_select 0, %s10, %s8
  $region1: #{tpu_custom_call.1} parent=0
    #allocation2 [shape = 'u8[4096]{0}', space=vmem, size = 0x1000, scoped, tag = 'input window, operand 0, single buffered']
    #allocation3 [shape = 's32[1]{0}', space=sflag, size = 0x4, scoped, tag = 'scoped memory for tpu_custom_call.1']
    #allocation4 [shape = 's32[1]{0}', space=sflag, size = 0x4, scoped, tag = 'scoped memory for tpu_custom_call.1']
    #allocation5 [shape = 'u8[131072]{0}', space=vmem, size = 0x20000, scoped, tag = 'input window, operand 1, single buffered']
    #allocation6 [shape = 's32[1]{0}', space=sflag, size = 0x4, scoped, tag = 'scoped memory for tpu_custom_call.1']
    #allocation7 [shape = 'u8[131072]{0}', space=vmem, size = 0x20000, scoped, tag = 'input window, operand 3, single buffered']
    #allocation8 [shape = 'u8[4096]{0}', space=vmem, size = 0x1000, scoped, tag = 'output window, operand 0, single buffered']
    #allocation9 [shape = 'u8[4096]{0}', space=vmem, size = 0x1000, scoped, tag = 'output window, operand 1, single buffered']
    #allocation10 [shape = 's32[1]{0}', space=sflag, size = 0x4, scoped, tag = 'scoped memory for tpu_custom_call.1']
    %12 = vsyncpa [#allocation3], 0
    %13 = vsyncpa [#allocation6], 0
    %14 = vsyncpa [#allocation4], 0
    %15 = vsyncpa [#allocation10], 0
    // Predicated region
    $region2: #{tpu_custom_call.1} parent=1 // pred_check
      _
    $region3: #{tpu_custom_call.1} parent=1 // pred_check_branch
      %17 = sbr.rel (0) target = $region5
    $region4: #{tpu_custom_call.1} parent=1 // pred_region
      %s19 = ssub.s32 128, 128
      %20 = vsyncadd [#allocation3], %s19
      %s22 = sshll.u32 [#allocation2], 4
      %s23 = int_to_ptr.vmem [resolvable:$true] %s22
      %25 = dma.hbm_to_vmem [thread:$0]  %s0, 128, %s23, [#allocation3]
    $region5: #{tpu_custom_call.1} parent=1 // pred_fallthru
      _
    // Predicated region
    $region6: #{tpu_custom_call.1} parent=1 // pred_check
      _
    $region7: #{tpu_custom_call.1} parent=1 // pred_check_branch
      %27 = sbr.rel (0) target = $region9
    $region8: #{tpu_custom_call.1} parent=1 // pred_region
      %s29 = ssub.s32 4096, 4096
      %30 = vsyncadd [#allocation6], %s29
      %s31 = sshll.u32 [#allocation5], 4
      %s32 = int_to_ptr.vmem [resolvable:$true] %s31
      %37 = dma.hbm_to_vmem [thread:$0]  %s1, 4096, %s32, [#allocation6], 64, 64, 4
    $region9: #{tpu_custom_call.1} parent=1 // pred_fallthru
      _
    // Predicated region
    $region10: #{tpu_custom_call.1} parent=1 // pred_check
      _
    $region11: #{tpu_custom_call.1} parent=1 // pred_check_branch
      %39 = sbr.rel (0) target = $region13
    $region12: #{tpu_custom_call.1} parent=1 // pred_region
      _
    $region13: #{tpu_custom_call.1} parent=1 // pred_fallthru
      _
    // Predicated region
    $region14: #{tpu_custom_call.1} parent=1 // pred_check
      _
    $region15: #{tpu_custom_call.1} parent=1 // pred_check_branch
      %41 = sbr.rel (0) target = $region17
    $region16: #{tpu_custom_call.1} parent=1 // pred_region
      %s43 = ssub.s32 4096, 4096
      %44 = vsyncadd [#allocation6], %s43
      %s45 = sshll.u32 [#allocation7], 4
      %s46 = int_to_ptr.vmem [resolvable:$true] %s45
      %51 = dma.hbm_to_vmem [thread:$0]  %s3, 4096, %s46, [#allocation6], 64, 64, 4
    $region17: #{tpu_custom_call.1} parent=1 // pred_fallthru
      _
    // Predicated region
    $region18: #{tpu_custom_call.1} parent=1 // pred_check
      _
    $region19: #{tpu_custom_call.1} parent=1 // pred_check_branch
      %53 = sbr.rel (0) target = $region21
    $region20: #{tpu_custom_call.1} parent=1 // pred_region
      _
    $region21: #{tpu_custom_call.1} parent=1 // pred_fallthru
      _
    // Predicated region
    $region22: #{tpu_custom_call.1} parent=1 // pred_check
      _
    $region23: #{tpu_custom_call.1} parent=1 // pred_check_branch
      %55 = sbr.rel (0) target = $region25
    $region24: #{tpu_custom_call.1} parent=1 // pred_region
      %56 = dma.done [#allocation3], 128
    $region25: #{tpu_custom_call.1} parent=1 // pred_fallthru
      _
    // Predicated region
    $region26: #{tpu_custom_call.1} parent=1 // pred_check
      _
    $region27: #{tpu_custom_call.1} parent=1 // pred_check_branch
      %58 = sbr.rel (0) target = $region29
    $region28: #{tpu_custom_call.1} parent=1 // pred_region
      %59 = dma.done [#allocation6], 4096
    $region29: #{tpu_custom_call.1} parent=1 // pred_fallthru
      _
    // Predicated region
    $region30: #{tpu_custom_call.1} parent=1 // pred_check
      _
    $region31: #{tpu_custom_call.1} parent=1 // pred_check_branch
      %61 = sbr.rel (0) target = $region33
    $region32: #{tpu_custom_call.1} parent=1 // pred_region
      %62 = dma.done [#allocation6], 4096
    $region33: #{tpu_custom_call.1} parent=1 // pred_fallthru
      _
    %v64 = vld [vmem:[#allocation2] sm:$0xff]
    %vm65 = vcmp.eq.f32.partialorder %v64, 0.0
    %v67 = vshra.s32 %v64, 23
    %v68 = vand.u32 %v67, 255
    %v69 = vsub.s32 126, %v68
    %v70 = vshll.u32 %v69, 23
    %v71 = vadd.s32 %v64, %v70
    %v73 = vmul.f32 %v71, 1024.0
    %v74 = vround.ne.pseudo %v73
    %v75 = vmul.f32 %v74, 0.0009765625
    %v76 = vadd.s32 %v68, 1
    %v77 = vshll.u32 %v76, 23
    %v79 = vsel %vm65, 0.0, %v75
    %v80 = vsel %vm65, 0.0, %v77
    %v81 = vadd.f32 %v79, 0.0625
    %v82 = vmul.f32 %v81, %v80
    %v83 = vpack.c.bf16 %v82, %v82
    %v84 = vunpack.c.l.bf16 %v83
    %v85 = vsub.f32 %v82, %v84
    %v86 = vpack.c.bf16 %v84, %v84
    %v87 = vpack.c.bf16 %v85, %v85
    %v88 = vpack.c.bf16 %v80, %v80
    %v89 = vld [vmem:[#allocation5] sm:$0xf]
    %v90 = vld [vmem:[#allocation5 + $0x4] sm:$0xf]
    %v91 = vld [vmem:[#allocation5 + $0x8] sm:$0xf]
    %v92 = vld [vmem:[#allocation5 + $0xc] sm:$0xf]
    %v93 = vld [vmem:[#allocation5 + $0x10] sm:$0xf]
    %v94 = vld [vmem:[#allocation5 + $0x14] sm:$0xf]
    %v95 = vld [vmem:[#allocation5 + $0x18] sm:$0xf]
    %v96 = vld [vmem:[#allocation5 + $0x1c] sm:$0xf]
    %v97 = vld [vmem:[#allocation5 + $0x20] sm:$0xf]
    %v98 = vld [vmem:[#allocation5 + $0x24] sm:$0xf]
    %v99 = vld [vmem:[#allocation5 + $0x28] sm:$0xf]
    %v100 = vld [vmem:[#allocation5 + $0x2c] sm:$0xf]
    %v101 = vld [vmem:[#allocation5 + $0x30] sm:$0xf]
    %v102 = vld [vmem:[#allocation5 + $0x34] sm:$0xf]
    %v103 = vld [vmem:[#allocation5 + $0x38] sm:$0xf]
    %v104 = vld [vmem:[#allocation5 + $0x3c] sm:$0xf]
    %v105 = vld [vmem:[#allocation5 + $0x40] sm:$0xf]
    %v106 = vld [vmem:[#allocation5 + $0x44] sm:$0xf]
    %v107 = vld [vmem:[#allocation5 + $0x48] sm:$0xf]
    %v108 = vld [vmem:[#allocation5 + $0x4c] sm:$0xf]
    %v109 = vld [vmem:[#allocation5 + $0x50] sm:$0xf]
    %v110 = vld [vmem:[#allocation5 + $0x54] sm:$0xf]
    %v111 = vld [vmem:[#allocation5 + $0x58] sm:$0xf]
    %v112 = vld [vmem:[#allocation5 + $0x5c] sm:$0xf]
    %v113 = vld [vmem:[#allocation5 + $0x60] sm:$0xf]
    %v114 = vld [vmem:[#allocation5 + $0x64] sm:$0xf]
    %v115 = vld [vmem:[#allocation5 + $0x68] sm:$0xf]
    %v116 = vld [vmem:[#allocation5 + $0x6c] sm:$0xf]
    %v117 = vld [vmem:[#allocation5 + $0x70] sm:$0xf]
    %v118 = vld [vmem:[#allocation5 + $0x74] sm:$0xf]
    %v119 = vld [vmem:[#allocation5 + $0x78] sm:$0xf]
    %v120 = vld [vmem:[#allocation5 + $0x7c] sm:$0xf]
    %v121 = vld [vmem:[#allocation5 + $0x80] sm:$0xf]
    %v122 = vld [vmem:[#allocation5 + $0x84] sm:$0xf]
    %v123 = vld [vmem:[#allocation5 + $0x88] sm:$0xf]
    %v124 = vld [vmem:[#allocation5 + $0x8c] sm:$0xf]
    %v125 = vld [vmem:[#allocation5 + $0x90] sm:$0xf]
    %v126 = vld [vmem:[#allocation5 + $0x94] sm:$0xf]
    %v127 = vld [vmem:[#allocation5 + $0x98] sm:$0xf]
    %v128 = vld [vmem:[#allocation5 + $0x9c] sm:$0xf]
    %v129 = vld [vmem:[#allocation5 + $0xa0] sm:$0xf]
    %v130 = vld [vmem:[#allocation5 + $0xa4] sm:$0xf]
    %v131 = vld [vmem:[#allocation5 + $0xa8] sm:$0xf]
    %v132 = vld [vmem:[#allocation5 + $0xac] sm:$0xf]
    %v133 = vld [vmem:[#allocation5 + $0xb0] sm:$0xf]
    %v134 = vld [vmem:[#allocation5 + $0xb4] sm:$0xf]
    %v135 = vld [vmem:[#allocation5 + $0xb8] sm:$0xf]
    %v136 = vld [vmem:[#allocation5 + $0xbc] sm:$0xf]
    %v137 = vld [vmem:[#allocation5 + $0xc0] sm:$0xf]
    %v138 = vld [vmem:[#allocation5 + $0xc4] sm:$0xf]
    %v139 = vld [vmem:[#allocation5 + $0xc8] sm:$0xf]
    %v140 = vld [vmem:[#allocation5 + $0xcc] sm:$0xf]
    %v141 = vld [vmem:[#allocation5 + $0xd0] sm:$0xf]
    %v142 = vld [vmem:[#allocation5 + $0xd4] sm:$0xf]
    %v143 = vld [vmem:[#allocation5 + $0xd8] sm:$0xf]
    %v144 = vld [vmem:[#allocation5 + $0xdc] sm:$0xf]
    %v145 = vld [vmem:[#allocation5 + $0xe0] sm:$0xf]
    %v146 = vld [vmem:[#allocation5 + $0xe4] sm:$0xf]
    %v147 = vld [vmem:[#allocation5 + $0xe8] sm:$0xf]
    %v148 = vld [vmem:[#allocation5 + $0xec] sm:$0xf]
    %v149 = vld [vmem:[#allocation5 + $0xf0] sm:$0xf]
    %v150 = vld [vmem:[#allocation5 + $0xf4] sm:$0xf]
    %v151 = vld [vmem:[#allocation5 + $0xf8] sm:$0xf]
    %v152 = vld [vmem:[#allocation5 + $0xfc] sm:$0xf]
    %v153 = vld [vmem:[%s2] sm:$0x1]
    %v155 = vlaneseq
    %v156 = vshrl.u32 %v155, 7
    %v157 = vsub.s32 0, %v156
    %v158 = vrot.slane %v153, %v157
    %v224 = vunpack.c.l.b16 %v89
    %v225 = vunpack.c.l.b16 %v90
    %v226 = vunpack.c.l.b16 %v91
    %v227 = vunpack.c.l.b16 %v92
    %v228 = vunpack.c.l.b16 %v93
    %v229 = vunpack.c.l.b16 %v94
    %v230 = vunpack.c.l.b16 %v95
    %v231 = vunpack.c.l.b16 %v96
    %v232 = vunpack.c.l.b16 %v97
    %v233 = vunpack.c.l.b16 %v98
    %v234 = vunpack.c.l.b16 %v99
    %v235 = vunpack.c.l.b16 %v100
    %v236 = vunpack.c.l.b16 %v101
    %v237 = vunpack.c.l.b16 %v102
    %v238 = vunpack.c.l.b16 %v103
    %v239 = vunpack.c.l.b16 %v104
    %v240 = vunpack.c.l.b16 %v105
    %v241 = vunpack.c.l.b16 %v106
    %v242 = vunpack.c.l.b16 %v107
    %v243 = vunpack.c.l.b16 %v108
    %v244 = vunpack.c.l.b16 %v109
    %v245 = vunpack.c.l.b16 %v110
    %v246 = vunpack.c.l.b16 %v111
    %v247 = vunpack.c.l.b16 %v112
    %v248 = vunpack.c.l.b16 %v113
    %v249 = vunpack.c.l.b16 %v114
    %v250 = vunpack.c.l.b16 %v115
    %v251 = vunpack.c.l.b16 %v116
    %v252 = vunpack.c.l.b16 %v117
    %v253 = vunpack.c.l.b16 %v118
    %v254 = vunpack.c.l.b16 %v119
    %v255 = vunpack.c.l.b16 %v120
    %v256 = vunpack.c.l.b16 %v121
    %v257 = vunpack.c.l.b16 %v122
    %v258 = vunpack.c.l.b16 %v123
    %v259 = vunpack.c.l.b16 %v124
    %v260 = vunpack.c.l.b16 %v125
    %v261 = vunpack.c.l.b16 %v126
    %v262 = vunpack.c.l.b16 %v127
    %v263 = vunpack.c.l.b16 %v128
    %v264 = vunpack.c.l.b16 %v129
    %v265 = vunpack.c.l.b16 %v130
    %v266 = vunpack.c.l.b16 %v131
    %v267 = vunpack.c.l.b16 %v132
    %v268 = vunpack.c.l.b16 %v133
    %v269 = vunpack.c.l.b16 %v134
    %v270 = vunpack.c.l.b16 %v135
    %v271 = vunpack.c.l.b16 %v136
    %v272 = vunpack.c.l.b16 %v137
    %v273 = vunpack.c.l.b16 %v138
    %v274 = vunpack.c.l.b16 %v139
    %v275 = vunpack.c.l.b16 %v140
    %v276 = vunpack.c.l.b16 %v141
    %v277 = vunpack.c.l.b16 %v142
    %v278 = vunpack.c.l.b16 %v143
    %v279 = vunpack.c.l.b16 %v144
    %v280 = vunpack.c.l.b16 %v145
    %v281 = vunpack.c.l.b16 %v146
    %v282 = vunpack.c.l.b16 %v147
    %v283 = vunpack.c.l.b16 %v148
    %v284 = vunpack.c.l.b16 %v149
    %v285 = vunpack.c.l.b16 %v150
    %v286 = vunpack.c.l.b16 %v151
    %v287 = vunpack.c.l.b16 %v152
    %v288 = vpack.c.b16 %v225, %v224
    %v289 = vpack.c.b16 %v227, %v226
    %v290 = vpack.c.b16 %v229, %v228
    %v291 = vpack.c.b16 %v231, %v230
    %v292 = vpack.c.b16 %v233, %v232
    %v293 = vpack.c.b16 %v235, %v234
    %v294 = vpack.c.b16 %v237, %v236
    %v295 = vpack.c.b16 %v239, %v238
    %v296 = vpack.c.b16 %v241, %v240
    %v297 = vpack.c.b16 %v243, %v242
    %v298 = vpack.c.b16 %v245, %v244
    %v299 = vpack.c.b16 %v247, %v246
    %v300 = vpack.c.b16 %v249, %v248
    %v301 = vpack.c.b16 %v251, %v250
    %v302 = vpack.c.b16 %v253, %v252
    %v303 = vpack.c.b16 %v255, %v254
    %v304 = vpack.c.b16 %v257, %v256
    %v305 = vpack.c.b16 %v259, %v258
    %v306 = vpack.c.b16 %v261, %v260
    %v307 = vpack.c.b16 %v263, %v262
    %v308 = vpack.c.b16 %v265, %v264
    %v309 = vpack.c.b16 %v267, %v266
    %v310 = vpack.c.b16 %v269, %v268
    %v311 = vpack.c.b16 %v271, %v270
    %v312 = vpack.c.b16 %v273, %v272
    %v313 = vpack.c.b16 %v275, %v274
    %v314 = vpack.c.b16 %v277, %v276
    %v315 = vpack.c.b16 %v279, %v278
    %v316 = vpack.c.b16 %v281, %v280
    %v317 = vpack.c.b16 %v283, %v282
    %v318 = vpack.c.b16 %v285, %v284
    %v319 = vpack.c.b16 %v287, %v286
    %352 = vmatprep.subr.bf16.mxu0 0
    %353 = vmatpush1.bf16.msra.mxu0 %v288
    %354 = vmatprep.subr.bf16.mxu0 0
    %355 = vmatpush1.bf16.msra.mxu0 %v289
    %356 = vmatprep.subr.bf16.mxu0 0
    %357 = vmatpush1.bf16.msra.mxu0 %v290
    %358 = vmatprep.subr.bf16.mxu0 0
    %359 = vmatpush1.bf16.msra.mxu0 %v291
    %360 = vmatprep.subr.bf16.mxu0 0
    %361 = vmatpush1.bf16.msra.mxu0 %v292
    %362 = vmatprep.subr.bf16.mxu0 0
    %363 = vmatpush1.bf16.msra.mxu0 %v293
    %364 = vmatprep.subr.bf16.mxu0 0
    %365 = vmatpush1.bf16.msra.mxu0 %v294
    %366 = vmatprep.subr.bf16.mxu0 0
    %367 = vmatpush1.bf16.msra.mxu0 %v295
    %368 = vmatprep.subr.bf16.mxu0 0
    %369 = vmatpush1.bf16.msra.mxu0 %v296
    %370 = vmatprep.subr.bf16.mxu0 0
    %371 = vmatpush1.bf16.msra.mxu0 %v297
    %372 = vmatprep.subr.bf16.mxu0 0
    %373 = vmatpush1.bf16.msra.mxu0 %v298
    %374 = vmatprep.subr.bf16.mxu0 0
    %375 = vmatpush1.bf16.msra.mxu0 %v299
    %376 = vmatprep.subr.bf16.mxu0 0
    %377 = vmatpush1.bf16.msra.mxu0 %v300
    %378 = vmatprep.subr.bf16.mxu0 0
    %379 = vmatpush1.bf16.msra.mxu0 %v301
    %380 = vmatprep.subr.bf16.mxu0 0
    %381 = vmatpush1.bf16.msra.mxu0 %v302
    %382 = vmatprep.subr.bf16.mxu0 0
    %383 = vmatpush1.bf16.msra.mxu0 %v303
    %384 = vmatprep.mubr.bf16.mxu0 %v87
    %385 = vmatmul.mubr.bf16.gmra.mrb[0].mxu0 %v86
    %v386 = vpop.f32.mrb[0].mxu0
    %v387 = vadd.f32 %v158, %v386
    %v388 = vpop.f32.mrb[0].mxu0
    %v389 = vpop.f32.mrb[0].mxu0
    %v390 = vpop.f32.mrb[0].mxu0
    %391 = vdwg.mxu0
    %392 = vmatprep.subr.bf16.mxu0 0
    %393 = vmatpush1.bf16.msra.mxu0 %v304
    %394 = vmatprep.subr.bf16.mxu0 0
    %395 = vmatpush1.bf16.msra.mxu0 %v305
    %396 = vmatprep.subr.bf16.mxu0 0
    %397 = vmatpush1.bf16.msra.mxu0 %v306
    %398 = vmatprep.subr.bf16.mxu0 0
    %399 = vmatpush1.bf16.msra.mxu0 %v307
    %400 = vmatprep.subr.bf16.mxu0 0
    %401 = vmatpush1.bf16.msra.mxu0 %v308
    %402 = vmatprep.subr.bf16.mxu0 0
    %403 = vmatpush1.bf16.msra.mxu0 %v309
    %404 = vmatprep.subr.bf16.mxu0 0
    %405 = vmatpush1.bf16.msra.mxu0 %v310
    %406 = vmatprep.subr.bf16.mxu0 0
    %407 = vmatpush1.bf16.msra.mxu0 %v311
    %408 = vmatprep.subr.bf16.mxu0 0
    %409 = vmatpush1.bf16.msra.mxu0 %v312
    %410 = vmatprep.subr.bf16.mxu0 0
    %411 = vmatpush1.bf16.msra.mxu0 %v313
    %412 = vmatprep.subr.bf16.mxu0 0
    %413 = vmatpush1.bf16.msra.mxu0 %v314
    %414 = vmatprep.subr.bf16.mxu0 0
    %415 = vmatpush1.bf16.msra.mxu0 %v315
    %416 = vmatprep.subr.bf16.mxu0 0
    %417 = vmatpush1.bf16.msra.mxu0 %v316
    %418 = vmatprep.subr.bf16.mxu0 0
    %419 = vmatpush1.bf16.msra.mxu0 %v317
    %420 = vmatprep.subr.bf16.mxu0 0
    %421 = vmatpush1.bf16.msra.mxu0 %v318
    %422 = vmatprep.subr.bf16.mxu0 0
    %423 = vmatpush1.bf16.msra.mxu0 %v319
    %424 = vmatprep.mubr.bf16.mxu0 %v88
    %425 = vmatmul.mubr.bf16.gmra.mrb[0].mxu0 %v88
    %v426 = vpop.f32.mrb[0].mxu0
    %v427 = vadd.f32 %v387, %v426
    %v428 = vpop.f32.mrb[0].mxu0
    %v429 = vpop.f32.mrb[0].mxu0
    %v430 = vpop.f32.mrb[0].mxu0
    %431 = vdwg.mxu0
    %v432 = vmax.f32 %v427, 0.0
    %vm433 = vcmp.eq.f32.partialorder %v432, 0.0
    %v435 = vshra.s32 %v432, 23
    %v436 = vand.u32 %v435, 255
    %v437 = vsub.s32 126, %v436
    %v438 = vshll.u32 %v437, 23
    %v439 = vadd.s32 %v432, %v438
    %v441 = vmul.f32 %v439, 1024.0
    %v442 = vround.ne.pseudo %v441
    %v443 = vmul.f32 %v442, 0.0009765625
    %v444 = vadd.s32 %v436, 1
    %v445 = vshll.u32 %v444, 23
    %v447 = vsel %vm433, 0.0, %v443
    %v448 = vsel %vm433, 0.0, %v445
    %v449 = vadd.f32 %v447, 0.0625
    %v450 = vmul.f32 %v449, %v448
    %v451 = vpack.c.bf16 %v450, %v450
    %v452 = vunpack.c.l.bf16 %v451
    %v453 = vsub.f32 %v450, %v452
    %v454 = vpack.c.bf16 %v452, %v452
    %v455 = vpack.c.bf16 %v453, %v453
    %v456 = vpack.c.bf16 %v448, %v448
    %v457 = vld [vmem:[#allocation7] sm:$0xf]
    %v458 = vld [vmem:[#allocation7 + $0x4] sm:$0xf]
    %v459 = vld [vmem:[#allocation7 + $0x8] sm:$0xf]
    %v460 = vld [vmem:[#allocation7 + $0xc] sm:$0xf]
    %v461 = vld [vmem:[#allocation7 + $0x10] sm:$0xf]
    %v462 = vld [vmem:[#allocation7 + $0x14] sm:$0xf]
    %v463 = vld [vmem:[#allocation7 + $0x18] sm:$0xf]
    %v464 = vld [vmem:[#allocation7 + $0x1c] sm:$0xf]
    %v465 = vld [vmem:[#allocation7 + $0x20] sm:$0xf]
    %v466 = vld [vmem:[#allocation7 + $0x24] sm:$0xf]
    %v467 = vld [vmem:[#allocation7 + $0x28] sm:$0xf]
    %v468 = vld [vmem:[#allocation7 + $0x2c] sm:$0xf]
    %v469 = vld [vmem:[#allocation7 + $0x30] sm:$0xf]
    %v470 = vld [vmem:[#allocation7 + $0x34] sm:$0xf]
    %v471 = vld [vmem:[#allocation7 + $0x38] sm:$0xf]
    %v472 = vld [vmem:[#allocation7 + $0x3c] sm:$0xf]
    %v473 = vld [vmem:[#allocation7 + $0x40] sm:$0xf]
    %v474 = vld [vmem:[#allocation7 + $0x44] sm:$0xf]
    %v475 = vld [vmem:[#allocation7 + $0x48] sm:$0xf]
    %v476 = vld [vmem:[#allocation7 + $0x4c] sm:$0xf]
    %v477 = vld [vmem:[#allocation7 + $0x50] sm:$0xf]
    %v478 = vld [vmem:[#allocation7 + $0x54] sm:$0xf]
    %v479 = vld [vmem:[#allocation7 + $0x58] sm:$0xf]
    %v480 = vld [vmem:[#allocation7 + $0x5c] sm:$0xf]
    %v481 = vld [vmem:[#allocation7 + $0x60] sm:$0xf]
    %v482 = vld [vmem:[#allocation7 + $0x64] sm:$0xf]
    %v483 = vld [vmem:[#allocation7 + $0x68] sm:$0xf]
    %v484 = vld [vmem:[#allocation7 + $0x6c] sm:$0xf]
    %v485 = vld [vmem:[#allocation7 + $0x70] sm:$0xf]
    %v486 = vld [vmem:[#allocation7 + $0x74] sm:$0xf]
    %v487 = vld [vmem:[#allocation7 + $0x78] sm:$0xf]
    %v488 = vld [vmem:[#allocation7 + $0x7c] sm:$0xf]
    %v489 = vld [vmem:[#allocation7 + $0x80] sm:$0xf]
    %v490 = vld [vmem:[#allocation7 + $0x84] sm:$0xf]
    %v491 = vld [vmem:[#allocation7 + $0x88] sm:$0xf]
    %v492 = vld [vmem:[#allocation7 + $0x8c] sm:$0xf]
    %v493 = vld [vmem:[#allocation7 + $0x90] sm:$0xf]
    %v494 = vld [vmem:[#allocation7 + $0x94] sm:$0xf]
    %v495 = vld [vmem:[#allocation7 + $0x98] sm:$0xf]
    %v496 = vld [vmem:[#allocation7 + $0x9c] sm:$0xf]
    %v497 = vld [vmem:[#allocation7 + $0xa0] sm:$0xf]
    %v498 = vld [vmem:[#allocation7 + $0xa4] sm:$0xf]
    %v499 = vld [vmem:[#allocation7 + $0xa8] sm:$0xf]
    %v500 = vld [vmem:[#allocation7 + $0xac] sm:$0xf]
    %v501 = vld [vmem:[#allocation7 + $0xb0] sm:$0xf]
    %v502 = vld [vmem:[#allocation7 + $0xb4] sm:$0xf]
    %v503 = vld [vmem:[#allocation7 + $0xb8] sm:$0xf]
    %v504 = vld [vmem:[#allocation7 + $0xbc] sm:$0xf]
    %v505 = vld [vmem:[#allocation7 + $0xc0] sm:$0xf]
    %v506 = vld [vmem:[#allocation7 + $0xc4] sm:$0xf]
    %v507 = vld [vmem:[#allocation7 + $0xc8] sm:$0xf]
    %v508 = vld [vmem:[#allocation7 + $0xcc] sm:$0xf]
    %v509 = vld [vmem:[#allocation7 + $0xd0] sm:$0xf]
    %v510 = vld [vmem:[#allocation7 + $0xd4] sm:$0xf]
    %v511 = vld [vmem:[#allocation7 + $0xd8] sm:$0xf]
    %v512 = vld [vmem:[#allocation7 + $0xdc] sm:$0xf]
    %v513 = vld [vmem:[#allocation7 + $0xe0] sm:$0xf]
    %v514 = vld [vmem:[#allocation7 + $0xe4] sm:$0xf]
    %v515 = vld [vmem:[#allocation7 + $0xe8] sm:$0xf]
    %v516 = vld [vmem:[#allocation7 + $0xec] sm:$0xf]
    %v517 = vld [vmem:[#allocation7 + $0xf0] sm:$0xf]
    %v518 = vld [vmem:[#allocation7 + $0xf4] sm:$0xf]
    %v519 = vld [vmem:[#allocation7 + $0xf8] sm:$0xf]
    %v520 = vld [vmem:[#allocation7 + $0xfc] sm:$0xf]
    %v521 = vld [vmem:[%s4] sm:$0x1]
    %v523 = vlaneseq
    %v524 = vshrl.u32 %v523, 7
    %v525 = vsub.s32 0, %v524
    %v526 = vrot.slane %v521, %v525
    %v592 = vunpack.c.l.b16 %v457
    %v593 = vunpack.c.l.b16 %v458
    %v594 = vunpack.c.l.b16 %v459
    %v595 = vunpack.c.l.b16 %v460
    %v596 = vunpack.c.l.b16 %v461
    %v597 = vunpack.c.l.b16 %v462
    %v598 = vunpack.c.l.b16 %v463
    %v599 = vunpack.c.l.b16 %v464
    %v600 = vunpack.c.l.b16 %v465
    %v601 = vunpack.c.l.b16 %v466
    %v602 = vunpack.c.l.b16 %v467
    %v603 = vunpack.c.l.b16 %v468
    %v604 = vunpack.c.l.b16 %v469
    %v605 = vunpack.c.l.b16 %v470
    %v606 = vunpack.c.l.b16 %v471
    %v607 = vunpack.c.l.b16 %v472
    %v608 = vunpack.c.l.b16 %v473
    %v609 = vunpack.c.l.b16 %v474
    %v610 = vunpack.c.l.b16 %v475
    %v611 = vunpack.c.l.b16 %v476
    %v612 = vunpack.c.l.b16 %v477
    %v613 = vunpack.c.l.b16 %v478
    %v614 = vunpack.c.l.b16 %v479
    %v615 = vunpack.c.l.b16 %v480
    %v616 = vunpack.c.l.b16 %v481
    %v617 = vunpack.c.l.b16 %v482
    %v618 = vunpack.c.l.b16 %v483
    %v619 = vunpack.c.l.b16 %v484
    %v620 = vunpack.c.l.b16 %v485
    %v621 = vunpack.c.l.b16 %v486
    %v622 = vunpack.c.l.b16 %v487
    %v623 = vunpack.c.l.b16 %v488
    %v624 = vunpack.c.l.b16 %v489
    %v625 = vunpack.c.l.b16 %v490
    %v626 = vunpack.c.l.b16 %v491
    %v627 = vunpack.c.l.b16 %v492
    %v628 = vunpack.c.l.b16 %v493
    %v629 = vunpack.c.l.b16 %v494
    %v630 = vunpack.c.l.b16 %v495
    %v631 = vunpack.c.l.b16 %v496
    %v632 = vunpack.c.l.b16 %v497
    %v633 = vunpack.c.l.b16 %v498
    %v634 = vunpack.c.l.b16 %v499
    %v635 = vunpack.c.l.b16 %v500
    %v636 = vunpack.c.l.b16 %v501
    %v637 = vunpack.c.l.b16 %v502
    %v638 = vunpack.c.l.b16 %v503
    %v639 = vunpack.c.l.b16 %v504
    %v640 = vunpack.c.l.b16 %v505
    %v641 = vunpack.c.l.b16 %v506
    %v642 = vunpack.c.l.b16 %v507
    %v643 = vunpack.c.l.b16 %v508
    %v644 = vunpack.c.l.b16 %v509
    %v645 = vunpack.c.l.b16 %v510
    %v646 = vunpack.c.l.b16 %v511
    %v647 = vunpack.c.l.b16 %v512
    %v648 = vunpack.c.l.b16 %v513
    %v649 = vunpack.c.l.b16 %v514
    %v650 = vunpack.c.l.b16 %v515
    %v651 = vunpack.c.l.b16 %v516
    %v652 = vunpack.c.l.b16 %v517
    %v653 = vunpack.c.l.b16 %v518
    %v654 = vunpack.c.l.b16 %v519
    %v655 = vunpack.c.l.b16 %v520
    %v656 = vpack.c.b16 %v593, %v592
    %v657 = vpack.c.b16 %v595, %v594
    %v658 = vpack.c.b16 %v597, %v596
    %v659 = vpack.c.b16 %v599, %v598
    %v660 = vpack.c.b16 %v601, %v600
    %v661 = vpack.c.b16 %v603, %v602
    %v662 = vpack.c.b16 %v605, %v604
    %v663 = vpack.c.b16 %v607, %v606
    %v664 = vpack.c.b16 %v609, %v608
    %v665 = vpack.c.b16 %v611, %v610
    %v666 = vpack.c.b16 %v613, %v612
    %v667 = vpack.c.b16 %v615, %v614
    %v668 = vpack.c.b16 %v617, %v616
    %v669 = vpack.c.b16 %v619, %v618
    %v670 = vpack.c.b16 %v621, %v620
    %v671 = vpack.c.b16 %v623, %v622
    %v672 = vpack.c.b16 %v625, %v624
    %v673 = vpack.c.b16 %v627, %v626
    %v674 = vpack.c.b16 %v629, %v628
    %v675 = vpack.c.b16 %v631, %v630
    %v676 = vpack.c.b16 %v633, %v632
    %v677 = vpack.c.b16 %v635, %v634
    %v678 = vpack.c.b16 %v637, %v636
    %v679 = vpack.c.b16 %v639, %v638
    %v680 = vpack.c.b16 %v641, %v640
    %v681 = vpack.c.b16 %v643, %v642
    %v682 = vpack.c.b16 %v645, %v644
    %v683 = vpack.c.b16 %v647, %v646
    %v684 = vpack.c.b16 %v649, %v648
    %v685 = vpack.c.b16 %v651, %v650
    %v686 = vpack.c.b16 %v653, %v652
    %v687 = vpack.c.b16 %v655, %v654
    %720 = vmatprep.subr.bf16.mxu0 0
    %721 = vmatpush1.bf16.msra.mxu0 %v656
    %722 = vmatprep.subr.bf16.mxu0 0
    %723 = vmatpush1.bf16.msra.mxu0 %v657
    %724 = vmatprep.subr.bf16.mxu0 0
    %725 = vmatpush1.bf16.msra.mxu0 %v658
    %726 = vmatprep.subr.bf16.mxu0 0
    %727 = vmatpush1.bf16.msra.mxu0 %v659
    %728 = vmatprep.subr.bf16.mxu0 0
    %729 = vmatpush1.bf16.msra.mxu0 %v660
    %730 = vmatprep.subr.bf16.mxu0 0
    %731 = vmatpush1.bf16.msra.mxu0 %v661
    %732 = vmatprep.subr.bf16.mxu0 0
    %733 = vmatpush1.bf16.msra.mxu0 %v662
    %734 = vmatprep.subr.bf16.mxu0 0
    %735 = vmatpush1.bf16.msra.mxu0 %v663
    %736 = vmatprep.subr.bf16.mxu0 0
    %737 = vmatpush1.bf16.msra.mxu0 %v664
    %738 = vmatprep.subr.bf16.mxu0 0
    %739 = vmatpush1.bf16.msra.mxu0 %v665
    %740 = vmatprep.subr.bf16.mxu0 0
    %741 = vmatpush1.bf16.msra.mxu0 %v666
    %742 = vmatprep.subr.bf16.mxu0 0
    %743 = vmatpush1.bf16.msra.mxu0 %v667
    %744 = vmatprep.subr.bf16.mxu0 0
    %745 = vmatpush1.bf16.msra.mxu0 %v668
    %746 = vmatprep.subr.bf16.mxu0 0
    %747 = vmatpush1.bf16.msra.mxu0 %v669
    %748 = vmatprep.subr.bf16.mxu0 0
    %749 = vmatpush1.bf16.msra.mxu0 %v670
    %750 = vmatprep.subr.bf16.mxu0 0
    %751 = vmatpush1.bf16.msra.mxu0 %v671
    %752 = vmatprep.mubr.bf16.mxu0 %v455
    %753 = vmatmul.mubr.bf16.gmra.mrb[0].mxu0 %v454
    %v754 = vpop.f32.mrb[0].mxu0
    %v755 = vadd.f32 %v526, %v754
    %v756 = vpop.f32.mrb[0].mxu0
    %v757 = vpop.f32.mrb[0].mxu0
    %v758 = vpop.f32.mrb[0].mxu0
    %759 = vdwg.mxu0
    %760 = vmatprep.subr.bf16.mxu0 0
    %761 = vmatpush1.bf16.msra.mxu0 %v672
    %762 = vmatprep.subr.bf16.mxu0 0
    %763 = vmatpush1.bf16.msra.mxu0 %v673
    %764 = vmatprep.subr.bf16.mxu0 0
    %765 = vmatpush1.bf16.msra.mxu0 %v674
    %766 = vmatprep.subr.bf16.mxu0 0
    %767 = vmatpush1.bf16.msra.mxu0 %v675
    %768 = vmatprep.subr.bf16.mxu0 0
    %769 = vmatpush1.bf16.msra.mxu0 %v676
    %770 = vmatprep.subr.bf16.mxu0 0
    %771 = vmatpush1.bf16.msra.mxu0 %v677
    %772 = vmatprep.subr.bf16.mxu0 0
    %773 = vmatpush1.bf16.msra.mxu0 %v678
    %774 = vmatprep.subr.bf16.mxu0 0
    %775 = vmatpush1.bf16.msra.mxu0 %v679
    %776 = vmatprep.subr.bf16.mxu0 0
    %777 = vmatpush1.bf16.msra.mxu0 %v680
    %778 = vmatprep.subr.bf16.mxu0 0
    %779 = vmatpush1.bf16.msra.mxu0 %v681
    %780 = vmatprep.subr.bf16.mxu0 0
    %781 = vmatpush1.bf16.msra.mxu0 %v682
    %782 = vmatprep.subr.bf16.mxu0 0
    %783 = vmatpush1.bf16.msra.mxu0 %v683
    %784 = vmatprep.subr.bf16.mxu0 0
    %785 = vmatpush1.bf16.msra.mxu0 %v684
    %786 = vmatprep.subr.bf16.mxu0 0
    %787 = vmatpush1.bf16.msra.mxu0 %v685
    %788 = vmatprep.subr.bf16.mxu0 0
    %789 = vmatpush1.bf16.msra.mxu0 %v686
    %790 = vmatprep.subr.bf16.mxu0 0
    %791 = vmatpush1.bf16.msra.mxu0 %v687
    %792 = vmatprep.mubr.bf16.mxu0 %v456
    %793 = vmatmul.mubr.bf16.gmra.mrb[0].mxu0 %v456
    %v794 = vpop.f32.mrb[0].mxu0
    %v795 = vadd.f32 %v755, %v794
    %v796 = vpop.f32.mrb[0].mxu0
    %v797 = vpop.f32.mrb[0].mxu0
    %v798 = vpop.f32.mrb[0].mxu0
    %799 = vdwg.mxu0
    %800 = vst [vmem:[#allocation8] sm:$0xff] %v795
    %801 = vst [vmem:[#allocation9] sm:$0xff] %v432
    // Predicated region
    $region34: #{tpu_custom_call.1} parent=1 // pred_check
      _
    $region35: #{tpu_custom_call.1} parent=1 // pred_check_branch
      %803 = sbr.rel (0) target = $region37
    $region36: #{tpu_custom_call.1} parent=1 // pred_region
      %s805 = ssub.s32 128, 128
      %806 = vsyncadd [#allocation4], %s805
      %s808 = sshll.u32 [#allocation8], 4
      %s809 = int_to_ptr.vmem [resolvable:$true] %s808
      %811 = dma.vmem_to_hbm [thread:$0]  %s809, 128, %s5, [#allocation4]
    $region37: #{tpu_custom_call.1} parent=1 // pred_fallthru
      _
    // Predicated region
    $region38: #{tpu_custom_call.1} parent=1 // pred_check
      _
    $region39: #{tpu_custom_call.1} parent=1 // pred_check_branch
      %813 = sbr.rel (0) target = $region41
    $region40: #{tpu_custom_call.1} parent=1 // pred_region
      %s815 = ssub.s32 128, 128
      %816 = vsyncadd [#allocation10], %s815
      %s818 = sshll.u32 [#allocation9], 4
      %s819 = int_to_ptr.vmem [resolvable:$true] %s818
      %821 = dma.vmem_to_hbm [thread:$0]  %s819, 128, %s6, [#allocation10]
    $region41: #{tpu_custom_call.1} parent=1 // pred_fallthru
      _
    // Predicated region
    $region42: #{tpu_custom_call.1} parent=1 // pred_check
      _
    $region43: #{tpu_custom_call.1} parent=1 // pred_check_branch
      %823 = sbr.rel (0) target = $region45
    $region44: #{tpu_custom_call.1} parent=1 // pred_region
      %824 = dma.done [#allocation4], 128
    $region45: #{tpu_custom_call.1} parent=1 // pred_fallthru
      _
    // Predicated region
    $region46: #{tpu_custom_call.1} parent=1 // pred_check
      _
    $region47: #{tpu_custom_call.1} parent=1 // pred_check_branch
      %826 = sbr.rel (0) target = $region49
    $region48: #{tpu_custom_call.1} parent=1 // pred_region
      %827 = dma.done [#allocation10], 128
    $region49: #{tpu_custom_call.1} parent=1 // pred_fallthru
      _
    %828 = vsyncpa [#allocation3], 1
    %829 = vsyncpa [#allocation6], 1
    %830 = vsyncpa [#allocation4], 1
    %831 = vsyncpa [#allocation10], 1

// kernel: tpu_custom_call.1
$region0: #{tpu_custom_call.1}
  #allocation0 [shape = 'u32[]', space=smem, size = 0x4, offset = 0x4, fixed_abs, tag = 'smem constant byte address 0x4 - core index']
  #allocation1 [shape = 'u32[144,128]{1,0:T(1,128)}', space=vmem, size = 0x12000, scoped, tag = 'internal scratch']
  %s0 = inlined_call_operand.hbm [shape: f32[8,128], index: 0, kind: input, shape index: {}]
  %s1 = inlined_call_operand.hbm [shape: bf16[512,128], index: 1, kind: input, shape index: {}]
  %s2 = inlined_call_operand.vmem [shape: f32[1,128], index: 2, kind: input, shape index: {}]
  %s3 = inlined_call_operand.hbm [shape: bf16[512,128], index: 3, kind: input, shape index: {}]
  %s4 = inlined_call_operand.vmem [shape: f32[1,128], index: 4, kind: input, shape index: {}]
  %s5 = inlined_call_operand.hbm [shape: f32[8,128], index: 5, kind: output, shape index: {0}]
  %s6 = inlined_call_operand.hbm [shape: f32[8,128], index: 6, kind: output, shape index: {1}]
  %7 = xla_tuple %s5, %s6
  %s8 = sld [smem:[#allocation0]]
  $region50: #{tpu_custom_call.1} parent=0
    _
  %s10 = ssub.s32 1, %s8
  %s11 = scalar_select 0, %s10, %s8
  $region1: #{tpu_custom_call.1} parent=0
    #allocation2 [shape = 'u8[4096]{0}', space=vmem, size = 0x1000, scoped, tag = 'input window, operand 0, single buffered']
    #allocation3 [shape = 's32[1]{0}', space=sflag, size = 0x4, scoped, tag = 'scoped memory for tpu_custom_call.1']
    #allocation4 [shape = 's32[1]{0}', space=sflag, size = 0x4, scoped, tag = 'scoped memory for tpu_custom_call.1']
    #allocation5 [shape = 'u8[131072]{0}', space=vmem, size = 0x20000, scoped, tag = 'input window, operand 1, single buffered']
    #allocation6 [shape = 's32[1]{0}', space=sflag, size = 0x4, scoped, tag = 'scoped memory for tpu_custom_call.1']
    #allocation7 [shape = 'u8[131072]{0}', space=vmem, size = 0x20000, scoped, tag = 'input window, operand 3, single buffered']
    #allocation8 [shape = 'u8[4096]{0}', space=vmem, size = 0x1000, scoped, tag = 'output window, operand 0, single buffered']
    #allocation9 [shape = 'u8[4096]{0}', space=vmem, size = 0x1000, scoped, tag = 'output window, operand 1, single buffered']
    #allocation10 [shape = 's32[1]{0}', space=sflag, size = 0x4, scoped, tag = 'scoped memory for tpu_custom_call.1']
    %12 = vsyncpa [#allocation3], 0
    %13 = vsyncpa [#allocation6], 0
    %14 = vsyncpa [#allocation4], 0
    %15 = vsyncpa [#allocation10], 0
    // Predicated region
    $region2: #{tpu_custom_call.1} parent=1 // pred_check
      _
    $region3: #{tpu_custom_call.1} parent=1 // pred_check_branch
      %17 = sbr.rel (0) target = $region5
    $region4: #{tpu_custom_call.1} parent=1 // pred_region
      %s19 = ssub.s32 128, 128
      %20 = vsyncadd [#allocation3], %s19
      %s22 = sshll.u32 [#allocation2], 4
      %s23 = int_to_ptr.vmem [resolvable:$true] %s22
      %25 = dma.hbm_to_vmem [thread:$0]  %s0, 128, %s23, [#allocation3]
    $region5: #{tpu_custom_call.1} parent=1 // pred_fallthru
      _
    // Predicated region
    $region6: #{tpu_custom_call.1} parent=1 // pred_check
      _
    $region7: #{tpu_custom_call.1} parent=1 // pred_check_branch
      %27 = sbr.rel (0) target = $region9
    $region8: #{tpu_custom_call.1} parent=1 // pred_region
      %s29 = ssub.s32 4096, 4096
      %30 = vsyncadd [#allocation6], %s29
      %s31 = sshll.u32 [#allocation5], 4
      %s32 = int_to_ptr.vmem [resolvable:$true] %s31
      %37 = dma.hbm_to_vmem [thread:$0]  %s1, 4096, %s32, [#allocation6], 64, 64, 4
    $region9: #{tpu_custom_call.1} parent=1 // pred_fallthru
      _
    // Predicated region
    $region10: #{tpu_custom_call.1} parent=1 // pred_check
      _
    $region11: #{tpu_custom_call.1} parent=1 // pred_check_branch
      %39 = sbr.rel (0) target = $region13
    $region12: #{tpu_custom_call.1} parent=1 // pred_region
      _
    $region13: #{tpu_custom_call.1} parent=1 // pred_fallthru
      _
    // Predicated region
    $region14: #{tpu_custom_call.1} parent=1 // pred_check
      _
    $region15: #{tpu_custom_call.1} parent=1 // pred_check_branch
      %41 = sbr.rel (0) target = $region17
    $region16: #{tpu_custom_call.1} parent=1 // pred_region
      %s43 = ssub.s32 4096, 4096
      %44 = vsyncadd [#allocation6], %s43
      %s45 = sshll.u32 [#allocation7], 4
      %s46 = int_to_ptr.vmem [resolvable:$true] %s45
      %51 = dma.hbm_to_vmem [thread:$0]  %s3, 4096, %s46, [#allocation6], 64, 64, 4
    $region17: #{tpu_custom_call.1} parent=1 // pred_fallthru
      _
    // Predicated region
    $region18: #{tpu_custom_call.1} parent=1 // pred_check
      _
    $region19: #{tpu_custom_call.1} parent=1 // pred_check_branch
      %53 = sbr.rel (0) target = $region21
    $region20: #{tpu_custom_call.1} parent=1 // pred_region
      _
    $region21: #{tpu_custom_call.1} parent=1 // pred_fallthru
      _
    // Predicated region
    $region22: #{tpu_custom_call.1} parent=1 // pred_check
      _
    $region23: #{tpu_custom_call.1} parent=1 // pred_check_branch
      %55 = sbr.rel (0) target = $region25
    $region24: #{tpu_custom_call.1} parent=1 // pred_region
      %56 = dma.done [#allocation3], 128
    $region25: #{tpu_custom_call.1} parent=1 // pred_fallthru
      _
    // Predicated region
    $region26: #{tpu_custom_call.1} parent=1 // pred_check
      _
    $region27: #{tpu_custom_call.1} parent=1 // pred_check_branch
      %58 = sbr.rel (0) target = $region29
    $region28: #{tpu_custom_call.1} parent=1 // pred_region
      %59 = dma.done [#allocation6], 4096
    $region29: #{tpu_custom_call.1} parent=1 // pred_fallthru
      _
    // Predicated region
    $region30: #{tpu_custom_call.1} parent=1 // pred_check
      _
    $region31: #{tpu_custom_call.1} parent=1 // pred_check_branch
      %61 = sbr.rel (0) target = $region33
    $region32: #{tpu_custom_call.1} parent=1 // pred_region
      %62 = dma.done [#allocation6], 4096
    $region33: #{tpu_custom_call.1} parent=1 // pred_fallthru
      _
    %v64 = vld [vmem:[#allocation2] sm:$0xff]
    %vm65 = vcmp.eq.f32.partialorder %v64, 0.0
    %v67 = vshra.s32 %v64, 23
    %v68 = vand.u32 %v67, 255
    %v69 = vsub.s32 126, %v68
    %v70 = vshll.u32 %v69, 23
    %v71 = vadd.s32 %v64, %v70
    %v73 = vmul.f32 %v71, 1024.0
    %v74 = vround.ne.pseudo %v73
    %v75 = vmul.f32 %v74, 0.0009765625
    %v76 = vadd.s32 %v68, 1
    %v77 = vshll.u32 %v76, 23
    %v79 = vsel %vm65, 0.0, %v75
    %v80 = vsel %vm65, 0.0, %v77
    %v81 = vadd.f32 %v79, 0.0625
    %v82 = vmul.f32 %v81, %v80
    %v83 = vpack.c.bf16 %v82, %v82
    %v84 = vunpack.c.l.bf16 %v83
    %v85 = vsub.f32 %v82, %v84
    %v86 = vpack.c.bf16 %v84, %v84
    %v87 = vpack.c.bf16 %v85, %v85
    %v88 = vpack.c.bf16 %v80, %v80
    %v89 = vld [vmem:[#allocation5] sm:$0xf]
    %v90 = vld [vmem:[#allocation5 + $0x4] sm:$0xf]
    %v91 = vld [vmem:[#allocation5 + $0x8] sm:$0xf]
    %v92 = vld [vmem:[#allocation5 + $0xc] sm:$0xf]
    %v93 = vld [vmem:[#allocation5 + $0x10] sm:$0xf]
    %v94 = vld [vmem:[#allocation5 + $0x14] sm:$0xf]
    %v95 = vld [vmem:[#allocation5 + $0x18] sm:$0xf]
    %v96 = vld [vmem:[#allocation5 + $0x1c] sm:$0xf]
    %v97 = vld [vmem:[#allocation5 + $0x20] sm:$0xf]
    %v98 = vld [vmem:[#allocation5 + $0x24] sm:$0xf]
    %v99 = vld [vmem:[#allocation5 + $0x28] sm:$0xf]
    %v100 = vld [vmem:[#allocation5 + $0x2c] sm:$0xf]
    %v101 = vld [vmem:[#allocation5 + $0x30] sm:$0xf]
    %v102 = vld [vmem:[#allocation5 + $0x34] sm:$0xf]
    %v103 = vld [vmem:[#allocation5 + $0x38] sm:$0xf]
    %v104 = vld [vmem:[#allocation5 + $0x3c] sm:$0xf]
    %v105 = vld [vmem:[#allocation5 + $0x40] sm:$0xf]
    %v106 = vld [vmem:[#allocation5 + $0x44] sm:$0xf]
    %v107 = vld [vmem:[#allocation5 + $0x48] sm:$0xf]
    %v108 = vld [vmem:[#allocation5 + $0x4c] sm:$0xf]
    %v109 = vld [vmem:[#allocation5 + $0x50] sm:$0xf]
    %v110 = vld [vmem:[#allocation5 + $0x54] sm:$0xf]
    %v111 = vld [vmem:[#allocation5 + $0x58] sm:$0xf]
    %v112 = vld [vmem:[#allocation5 + $0x5c] sm:$0xf]
    %v113 = vld [vmem:[#allocation5 + $0x60] sm:$0xf]
    %v114 = vld [vmem:[#allocation5 + $0x64] sm:$0xf]
    %v115 = vld [vmem:[#allocation5 + $0x68] sm:$0xf]
    %v116 = vld [vmem:[#allocation5 + $0x6c] sm:$0xf]
    %v117 = vld [vmem:[#allocation5 + $0x70] sm:$0xf]
    %v118 = vld [vmem:[#allocation5 + $0x74] sm:$0xf]
    %v119 = vld [vmem:[#allocation5 + $0x78] sm:$0xf]
    %v120 = vld [vmem:[#allocation5 + $0x7c] sm:$0xf]
    %v121 = vld [vmem:[#allocation5 + $0x80] sm:$0xf]
    %v122 = vld [vmem:[#allocation5 + $0x84] sm:$0xf]
    %v123 = vld [vmem:[#allocation5 + $0x88] sm:$0xf]
    %v124 = vld [vmem:[#allocation5 + $0x8c] sm:$0xf]
    %v125 = vld [vmem:[#allocation5 + $0x90] sm:$0xf]
    %v126 = vld [vmem:[#allocation5 + $0x94] sm:$0xf]
    %v127 = vld [vmem:[#allocation5 + $0x98] sm:$0xf]
    %v128 = vld [vmem:[#allocation5 + $0x9c] sm:$0xf]
    %v129 = vld [vmem:[#allocation5 + $0xa0] sm:$0xf]
    %v130 = vld [vmem:[#allocation5 + $0xa4] sm:$0xf]
    %v131 = vld [vmem:[#allocation5 + $0xa8] sm:$0xf]
    %v132 = vld [vmem:[#allocation5 + $0xac] sm:$0xf]
    %v133 = vld [vmem:[#allocation5 + $0xb0] sm:$0xf]
    %v134 = vld [vmem:[#allocation5 + $0xb4] sm:$0xf]
    %v135 = vld [vmem:[#allocation5 + $0xb8] sm:$0xf]
    %v136 = vld [vmem:[#allocation5 + $0xbc] sm:$0xf]
    %v137 = vld [vmem:[#allocation5 + $0xc0] sm:$0xf]
    %v138 = vld [vmem:[#allocation5 + $0xc4] sm:$0xf]
    %v139 = vld [vmem:[#allocation5 + $0xc8] sm:$0xf]
    %v140 = vld [vmem:[#allocation5 + $0xcc] sm:$0xf]
    %v141 = vld [vmem:[#allocation5 + $0xd0] sm:$0xf]
    %v142 = vld [vmem:[#allocation5 + $0xd4] sm:$0xf]
    %v143 = vld [vmem:[#allocation5 + $0xd8] sm:$0xf]
    %v144 = vld [vmem:[#allocation5 + $0xdc] sm:$0xf]
    %v145 = vld [vmem:[#allocation5 + $0xe0] sm:$0xf]
    %v146 = vld [vmem:[#allocation5 + $0xe4] sm:$0xf]
    %v147 = vld [vmem:[#allocation5 + $0xe8] sm:$0xf]
    %v148 = vld [vmem:[#allocation5 + $0xec] sm:$0xf]
    %v149 = vld [vmem:[#allocation5 + $0xf0] sm:$0xf]
    %v150 = vld [vmem:[#allocation5 + $0xf4] sm:$0xf]
    %v151 = vld [vmem:[#allocation5 + $0xf8] sm:$0xf]
    %v152 = vld [vmem:[#allocation5 + $0xfc] sm:$0xf]
    %v153 = vld [vmem:[%s2] sm:$0x1]
    %v155 = vlaneseq
    %v156 = vshrl.u32 %v155, 7
    %v157 = vsub.s32 0, %v156
    %v158 = vrot.slane %v153, %v157
    %v224 = vunpack.c.l.b16 %v89
    %v225 = vunpack.c.l.b16 %v90
    %v226 = vunpack.c.l.b16 %v91
    %v227 = vunpack.c.l.b16 %v92
    %v228 = vunpack.c.l.b16 %v93
    %v229 = vunpack.c.l.b16 %v94
    %v230 = vunpack.c.l.b16 %v95
    %v231 = vunpack.c.l.b16 %v96
    %v232 = vunpack.c.l.b16 %v97
    %v233 = vunpack.c.l.b16 %v98
    %v234 = vunpack.c.l.b16 %v99
    %v235 = vunpack.c.l.b16 %v100
    %v236 = vunpack.c.l.b16 %v101
    %v237 = vunpack.c.l.b16 %v102
    %v238 = vunpack.c.l.b16 %v103
    %v239 = vunpack.c.l.b16 %v104
    %v240 = vunpack.c.l.b16 %v105
    %v241 = vunpack.c.l.b16 %v106
    %v242 = vunpack.c.l.b16 %v107
    %v243 = vunpack.c.l.b16 %v108
    %v244 = vunpack.c.l.b16 %v109
    %v245 = vunpack.c.l.b16 %v110
    %v246 = vunpack.c.l.b16 %v111
    %v247 = vunpack.c.l.b16 %v112
    %v248 = vunpack.c.l.b16 %v113
    %v249 = vunpack.c.l.b16 %v114
    %v250 = vunpack.c.l.b16 %v115
    %v251 = vunpack.c.l.b16 %v116
    %v252 = vunpack.c.l.b16 %v117
    %v253 = vunpack.c.l.b16 %v118
    %v254 = vunpack.c.l.b16 %v119
    %v255 = vunpack.c.l.b16 %v120
    %v256 = vunpack.c.l.b16 %v121
    %v257 = vunpack.c.l.b16 %v122
    %v258 = vunpack.c.l.b16 %v123
    %v259 = vunpack.c.l.b16 %v124
    %v260 = vunpack.c.l.b16 %v125
    %v261 = vunpack.c.l.b16 %v126
    %v262 = vunpack.c.l.b16 %v127
    %v263 = vunpack.c.l.b16 %v128
    %v264 = vunpack.c.l.b16 %v129
    %v265 = vunpack.c.l.b16 %v130
    %v266 = vunpack.c.l.b16 %v131
    %v267 = vunpack.c.l.b16 %v132
    %v268 = vunpack.c.l.b16 %v133
    %v269 = vunpack.c.l.b16 %v134
    %v270 = vunpack.c.l.b16 %v135
    %v271 = vunpack.c.l.b16 %v136
    %v272 = vunpack.c.l.b16 %v137
    %v273 = vunpack.c.l.b16 %v138
    %v274 = vunpack.c.l.b16 %v139
    %v275 = vunpack.c.l.b16 %v140
    %v276 = vunpack.c.l.b16 %v141
    %v277 = vunpack.c.l.b16 %v142
    %v278 = vunpack.c.l.b16 %v143
    %v279 = vunpack.c.l.b16 %v144
    %v280 = vunpack.c.l.b16 %v145
    %v281 = vunpack.c.l.b16 %v146
    %v282 = vunpack.c.l.b16 %v147
    %v283 = vunpack.c.l.b16 %v148
    %v284 = vunpack.c.l.b16 %v149
    %v285 = vunpack.c.l.b16 %v150
    %v286 = vunpack.c.l.b16 %v151
    %v287 = vunpack.c.l.b16 %v152
    %v288 = vpack.c.b16 %v225, %v224
    %v289 = vpack.c.b16 %v227, %v226
    %v290 = vpack.c.b16 %v229, %v228
    %v291 = vpack.c.b16 %v231, %v230
    %v292 = vpack.c.b16 %v233, %v232
    %v293 = vpack.c.b16 %v235, %v234
    %v294 = vpack.c.b16 %v237, %v236
    %v295 = vpack.c.b16 %v239, %v238
    %v296 = vpack.c.b16 %v241, %v240
    %v297 = vpack.c.b16 %v243, %v242
    %v298 = vpack.c.b16 %v245, %v244
    %v299 = vpack.c.b16 %v247, %v246
    %v300 = vpack.c.b16 %v249, %v248
    %v301 = vpack.c.b16 %v251, %v250
    %v302 = vpack.c.b16 %v253, %v252
    %v303 = vpack.c.b16 %v255, %v254
    %v304 = vpack.c.b16 %v257, %v256
    %v305 = vpack.c.b16 %v259, %v258
    %v306 = vpack.c.b16 %v261, %v260
    %v307 = vpack.c.b16 %v263, %v262
    %v308 = vpack.c.b16 %v265, %v264
    %v309 = vpack.c.b16 %v267, %v266
    %v310 = vpack.c.b16 %v269, %v268
    %v311 = vpack.c.b16 %v271, %v270
    %v312 = vpack.c.b16 %v273, %v272
    %v313 = vpack.c.b16 %v275, %v274
    %v314 = vpack.c.b16 %v277, %v276
    %v315 = vpack.c.b16 %v279, %v278
    %v316 = vpack.c.b16 %v281, %v280
    %v317 = vpack.c.b16 %v283, %v282
    %v318 = vpack.c.b16 %v285, %v284
    %v319 = vpack.c.b16 %v287, %v286
    %352 = vmatprep.subr.bf16.mxu0 0
    %353 = vmatpush1.bf16.msra.mxu0 %v288
    %354 = vmatprep.subr.bf16.mxu0 0
    %355 = vmatpush1.bf16.msra.mxu0 %v289
    %356 = vmatprep.subr.bf16.mxu0 0
    %357 = vmatpush1.bf16.msra.mxu0 %v290
    %358 = vmatprep.subr.bf16.mxu0 0
    %359 = vmatpush1.bf16.msra.mxu0 %v291
    %360 = vmatprep.subr.bf16.mxu0 0
    %361 = vmatpush1.bf16.msra.mxu0 %v292
    %362 = vmatprep.subr.bf16.mxu0 0
    %363 = vmatpush1.bf16.msra.mxu0 %v293
    %364 = vmatprep.subr.bf16.mxu0 0
    %365 = vmatpush1.bf16.msra.mxu0 %v294
    %366 = vmatprep.subr.bf16.mxu0 0
    %367 = vmatpush1.bf16.msra.mxu0 %v295
    %368 = vmatprep.subr.bf16.mxu0 0
    %369 = vmatpush1.bf16.msra.mxu0 %v296
    %370 = vmatprep.subr.bf16.mxu0 0
    %371 = vmatpush1.bf16.msra.mxu0 %v297
    %372 = vmatprep.subr.bf16.mxu0 0
    %373 = vmatpush1.bf16.msra.mxu0 %v298
    %374 = vmatprep.subr.bf16.mxu0 0
    %375 = vmatpush1.bf16.msra.mxu0 %v299
    %376 = vmatprep.subr.bf16.mxu0 0
    %377 = vmatpush1.bf16.msra.mxu0 %v300
    %378 = vmatprep.subr.bf16.mxu0 0
    %379 = vmatpush1.bf16.msra.mxu0 %v301
    %380 = vmatprep.subr.bf16.mxu0 0
    %381 = vmatpush1.bf16.msra.mxu0 %v302
    %382 = vmatprep.subr.bf16.mxu0 0
    %383 = vmatpush1.bf16.msra.mxu0 %v303
    %384 = vmatprep.mubr.bf16.mxu0 %v87
    %385 = vmatmul.mubr.bf16.gmra.mrb[0].mxu0 %v86
    %v386 = vpop.f32.mrb[0].mxu0
    %v387 = vadd.f32 %v158, %v386
    %v388 = vpop.f32.mrb[0].mxu0
    %v389 = vpop.f32.mrb[0].mxu0
    %v390 = vpop.f32.mrb[0].mxu0
    %391 = vdwg.mxu0
    %392 = vmatprep.subr.bf16.mxu0 0
    %393 = vmatpush1.bf16.msra.mxu0 %v304
    %394 = vmatprep.subr.bf16.mxu0 0
    %395 = vmatpush1.bf16.msra.mxu0 %v305
    %396 = vmatprep.subr.bf16.mxu0 0
    %397 = vmatpush1.bf16.msra.mxu0 %v306
    %398 = vmatprep.subr.bf16.mxu0 0
    %399 = vmatpush1.bf16.msra.mxu0 %v307
    %400 = vmatprep.subr.bf16.mxu0 0
    %401 = vmatpush1.bf16.msra.mxu0 %v308
    %402 = vmatprep.subr.bf16.mxu0 0
    %403 = vmatpush1.bf16.msra.mxu0 %v309
    %404 = vmatprep.subr.bf16.mxu0 0
    %405 = vmatpush1.bf16.msra.mxu0 %v310
    %406 = vmatprep.subr.bf16.mxu0 0
    %407 = vmatpush1.bf16.msra.mxu0 %v311
    %408 = vmatprep.subr.bf16.mxu0 0
    %409 = vmatpush1.bf16.msra.mxu0 %v312
    %410 = vmatprep.subr.bf16.mxu0 0
    %411 = vmatpush1.bf16.msra.mxu0 %v313
    %412 = vmatprep.subr.bf16.mxu0 0
    %413 = vmatpush1.bf16.msra.mxu0 %v314
    %414 = vmatprep.subr.bf16.mxu0 0
    %415 = vmatpush1.bf16.msra.mxu0 %v315
    %416 = vmatprep.subr.bf16.mxu0 0
    %417 = vmatpush1.bf16.msra.mxu0 %v316
    %418 = vmatprep.subr.bf16.mxu0 0
    %419 = vmatpush1.bf16.msra.mxu0 %v317
    %420 = vmatprep.subr.bf16.mxu0 0
    %421 = vmatpush1.bf16.msra.mxu0 %v318
    %422 = vmatprep.subr.bf16.mxu0 0
    %423 = vmatpush1.bf16.msra.mxu0 %v319
    %424 = vmatprep.mubr.bf16.mxu0 %v88
    %425 = vmatmul.mubr.bf16.gmra.mrb[0].mxu0 %v88
    %v426 = vpop.f32.mrb[0].mxu0
    %v427 = vadd.f32 %v387, %v426
    %v428 = vpop.f32.mrb[0].mxu0
    %v429 = vpop.f32.mrb[0].mxu0
    %v430 = vpop.f32.mrb[0].mxu0
    %431 = vdwg.mxu0
    %v432 = vmax.f32 %v427, 0.0
    %vm433 = vcmp.eq.f32.partialorder %v432, 0.0
    %v435 = vshra.s32 %v432, 23
    %v436 = vand.u32 %v435, 255
    %v437 = vsub.s32 126, %v436
    %v438 = vshll.u32 %v437, 23
    %v439 = vadd.s32 %v432, %v438
    %v441 = vmul.f32 %v439, 1024.0
    %v442 = vround.ne.pseudo %v441
    %v443 = vmul.f32 %v442, 0.0009765625
    %v444 = vadd.s32 %v436, 1
    %v445 = vshll.u32 %v444, 23
    %v447 = vsel %vm433, 0.0, %v443
    %v448 = vsel %vm433, 0.0, %v445
    %v449 = vadd.f32 %v447, 0.0625
    %v450 = vmul.f32 %v449, %v448
    %v451 = vpack.c.bf16 %v450, %v450
    %v452 = vunpack.c.l.bf16 %v451
    %v453 = vsub.f32 %v450, %v452
    %v454 = vpack.c.bf16 %v452, %v452
    %v455 = vpack.c.bf16 %v453, %v453
    %v456 = vpack.c.bf16 %v448, %v448
    %v457 = vld [vmem:[#allocation7] sm:$0xf]
    %v458 = vld [vmem:[#allocation7 + $0x4] sm:$0xf]
    %v459 = vld [vmem:[#allocation7 + $0x8] sm:$0xf]
    %v460 = vld [vmem:[#allocation7 + $0xc] sm:$0xf]
    %v461 = vld [vmem:[#allocation7 + $0x10] sm:$0xf]
    %v462 = vld [vmem:[#allocation7 + $0x14] sm:$0xf]
    %v463 = vld [vmem:[#allocation7 + $0x18] sm:$0xf]
    %v464 = vld [vmem:[#allocation7 + $0x1c] sm:$0xf]
    %v465 = vld [vmem:[#allocation7 + $0x20] sm:$0xf]
    %v466 = vld [vmem:[#allocation7 + $0x24] sm:$0xf]
    %v467 = vld [vmem:[#allocation7 + $0x28] sm:$0xf]
    %v468 = vld [vmem:[#allocation7 + $0x2c] sm:$0xf]
    %v469 = vld [vmem:[#allocation7 + $0x30] sm:$0xf]
    %v470 = vld [vmem:[#allocation7 + $0x34] sm:$0xf]
    %v471 = vld [vmem:[#allocation7 + $0x38] sm:$0xf]
    %v472 = vld [vmem:[#allocation7 + $0x3c] sm:$0xf]
    %v473 = vld [vmem:[#allocation7 + $0x40] sm:$0xf]
    %v474 = vld [vmem:[#allocation7 + $0x44] sm:$0xf]
    %v475 = vld [vmem:[#allocation7 + $0x48] sm:$0xf]
    %v476 = vld [vmem:[#allocation7 + $0x4c] sm:$0xf]
    %v477 = vld [vmem:[#allocation7 + $0x50] sm:$0xf]
    %v478 = vld [vmem:[#allocation7 + $0x54] sm:$0xf]
    %v479 = vld [vmem:[#allocation7 + $0x58] sm:$0xf]
    %v480 = vld [vmem:[#allocation7 + $0x5c] sm:$0xf]
    %v481 = vld [vmem:[#allocation7 + $0x60] sm:$0xf]
    %v482 = vld [vmem:[#allocation7 + $0x64] sm:$0xf]
    %v483 = vld [vmem:[#allocation7 + $0x68] sm:$0xf]
    %v484 = vld [vmem:[#allocation7 + $0x6c] sm:$0xf]
    %v485 = vld [vmem:[#allocation7 + $0x70] sm:$0xf]
    %v486 = vld [vmem:[#allocation7 + $0x74] sm:$0xf]
    %v487 = vld [vmem:[#allocation7 + $0x78] sm:$0xf]
    %v488 = vld [vmem:[#allocation7 + $0x7c] sm:$0xf]
    %v489 = vld [vmem:[#allocation7 + $0x80] sm:$0xf]
    %v490 = vld [vmem:[#allocation7 + $0x84] sm:$0xf]
    %v491 = vld [vmem:[#allocation7 + $0x88] sm:$0xf]
    %v492 = vld [vmem:[#allocation7 + $0x8c] sm:$0xf]
    %v493 = vld [vmem:[#allocation7 + $0x90] sm:$0xf]
    %v494 = vld [vmem:[#allocation7 + $0x94] sm:$0xf]
    %v495 = vld [vmem:[#allocation7 + $0x98] sm:$0xf]
    %v496 = vld [vmem:[#allocation7 + $0x9c] sm:$0xf]
    %v497 = vld [vmem:[#allocation7 + $0xa0] sm:$0xf]
    %v498 = vld [vmem:[#allocation7 + $0xa4] sm:$0xf]
    %v499 = vld [vmem:[#allocation7 + $0xa8] sm:$0xf]
    %v500 = vld [vmem:[#allocation7 + $0xac] sm:$0xf]
    %v501 = vld [vmem:[#allocation7 + $0xb0] sm:$0xf]
    %v502 = vld [vmem:[#allocation7 + $0xb4] sm:$0xf]
    %v503 = vld [vmem:[#allocation7 + $0xb8] sm:$0xf]
    %v504 = vld [vmem:[#allocation7 + $0xbc] sm:$0xf]
    %v505 = vld [vmem:[#allocation7 + $0xc0] sm:$0xf]
    %v506 = vld [vmem:[#allocation7 + $0xc4] sm:$0xf]
    %v507 = vld [vmem:[#allocation7 + $0xc8] sm:$0xf]
    %v508 = vld [vmem:[#allocation7 + $0xcc] sm:$0xf]
    %v509 = vld [vmem:[#allocation7 + $0xd0] sm:$0xf]
    %v510 = vld [vmem:[#allocation7 + $0xd4] sm:$0xf]
    %v511 = vld [vmem:[#allocation7 + $0xd8] sm:$0xf]
    %v512 = vld [vmem:[#allocation7 + $0xdc] sm:$0xf]
    %v513 = vld [vmem:[#allocation7 + $0xe0] sm:$0xf]
    %v514 = vld [vmem:[#allocation7 + $0xe4] sm:$0xf]
    %v515 = vld [vmem:[#allocation7 + $0xe8] sm:$0xf]
    %v516 = vld [vmem:[#allocation7 + $0xec] sm:$0xf]
    %v517 = vld [vmem:[#allocation7 + $0xf0] sm:$0xf]
    %v518 = vld [vmem:[#allocation7 + $0xf4] sm:$0xf]
    %v519 = vld [vmem:[#allocation7 + $0xf8] sm:$0xf]
    %v520 = vld [vmem:[#allocation7 + $0xfc] sm:$0xf]
    %v521 = vld [vmem:[%s4] sm:$0x1]
    %v523 = vlaneseq
    %v524 = vshrl.u32 %v523, 7
    %v525 = vsub.s32 0, %v524
    %v526 = vrot.slane %v521, %v525
    %v592 = vunpack.c.l.b16 %v457
    %v593 = vunpack.c.l.b16 %v458
    %v594 = vunpack.c.l.b16 %v459
    %v595 = vunpack.c.l.b16 %v460
    %v596 = vunpack.c.l.b16 %v461
    %v597 = vunpack.c.l.b16 %v462
    %v598 = vunpack.c.l.b16 %v463
    %v599 = vunpack.c.l.b16 %v464
    %v600 = vunpack.c.l.b16 %v465
    %v601 = vunpack.c.l.b16 %v466
    %v602 = vunpack.c.l.b16 %v467
    %v603 = vunpack.c.l.b16 %v468
    %v604 = vunpack.c.l.b16 %v469
    %v605 = vunpack.c.l.b16 %v470
    %v606 = vunpack.c.l.b16 %v471
    %v607 = vunpack.c.l.b16 %v472
    %v608 = vunpack.c.l.b16 %v473
    %v609 = vunpack.c.l.b16 %v474
    %v610 = vunpack.c.l.b16 %v475
    %v611 = vunpack.c.l.b16 %v476
    %v612 = vunpack.c.l.b16 %v477
    %v613 = vunpack.c.l.b16 %v478
    %v614 = vunpack.c.l.b16 %v479
    %v615 = vunpack.c.l.b16 %v480
    %v616 = vunpack.c.l.b16 %v481
    %v617 = vunpack.c.l.b16 %v482
    %v618 = vunpack.c.l.b16 %v483
    %v619 = vunpack.c.l.b16 %v484
    %v620 = vunpack.c.l.b16 %v485
    %v621 = vunpack.c.l.b16 %v486
    %v622 = vunpack.c.l.b16 %v487
    %v623 = vunpack.c.l.b16 %v488
    %v624 = vunpack.c.l.b16 %v489
    %v625 = vunpack.c.l.b16 %v490
    %v626 = vunpack.c.l.b16 %v491
    %v627 = vunpack.c.l.b16 %v492
    %v628 = vunpack.c.l.b16 %v493
    %v629 = vunpack.c.l.b16 %v494
    %v630 = vunpack.c.l.b16 %v495
    %v631 = vunpack.c.l.b16 %v496
    %v632 = vunpack.c.l.b16 %v497
    %v633 = vunpack.c.l.b16 %v498
    %v634 = vunpack.c.l.b16 %v499
    %v635 = vunpack.c.l.b16 %v500
    %v636 = vunpack.c.l.b16 %v501
    %v637 = vunpack.c.l.b16 %v502
    %v638 = vunpack.c.l.b16 %v503
    %v639 = vunpack.c.l.b16 %v504
    %v640 = vunpack.c.l.b16 %v505
    %v641 = vunpack.c.l.b16 %v506
    %v642 = vunpack.c.l.b16 %v507
    %v643 = vunpack.c.l.b16 %v508
    %v644 = vunpack.c.l.b16 %v509
    %v645 = vunpack.c.l.b16 %v510
    %v646 = vunpack.c.l.b16 %v511
    %v647 = vunpack.c.l.b16 %v512
    %v648 = vunpack.c.l.b16 %v513
    %v649 = vunpack.c.l.b16 %v514
    %v650 = vunpack.c.l.b16 %v515
    %v651 = vunpack.c.l.b16 %v516
    %v652 = vunpack.c.l.b16 %v517
    %v653 = vunpack.c.l.b16 %v518
    %v654 = vunpack.c.l.b16 %v519
    %v655 = vunpack.c.l.b16 %v520
    %v656 = vpack.c.b16 %v593, %v592
    %v657 = vpack.c.b16 %v595, %v594
    %v658 = vpack.c.b16 %v597, %v596
    %v659 = vpack.c.b16 %v599, %v598
    %v660 = vpack.c.b16 %v601, %v600
    %v661 = vpack.c.b16 %v603, %v602
    %v662 = vpack.c.b16 %v605, %v604
    %v663 = vpack.c.b16 %v607, %v606
    %v664 = vpack.c.b16 %v609, %v608
    %v665 = vpack.c.b16 %v611, %v610
    %v666 = vpack.c.b16 %v613, %v612
    %v667 = vpack.c.b16 %v615, %v614
    %v668 = vpack.c.b16 %v617, %v616
    %v669 = vpack.c.b16 %v619, %v618
    %v670 = vpack.c.b16 %v621, %v620
    %v671 = vpack.c.b16 %v623, %v622
    %v672 = vpack.c.b16 %v625, %v624
    %v673 = vpack.c.b16 %v627, %v626
    %v674 = vpack.c.b16 %v629, %v628
    %v675 = vpack.c.b16 %v631, %v630
    %v676 = vpack.c.b16 %v633, %v632
    %v677 = vpack.c.b16 %v635, %v634
    %v678 = vpack.c.b16 %v637, %v636
    %v679 = vpack.c.b16 %v639, %v638
    %v680 = vpack.c.b16 %v641, %v640
    %v681 = vpack.c.b16 %v643, %v642
    %v682 = vpack.c.b16 %v645, %v644
    %v683 = vpack.c.b16 %v647, %v646
    %v684 = vpack.c.b16 %v649, %v648
    %v685 = vpack.c.b16 %v651, %v650
    %v686 = vpack.c.b16 %v653, %v652
    %v687 = vpack.c.b16 %v655, %v654
    %720 = vmatprep.subr.bf16.mxu0 0
    %721 = vmatpush1.bf16.msra.mxu0 %v656
    %722 = vmatprep.subr.bf16.mxu0 0
    %723 = vmatpush1.bf16.msra.mxu0 %v657
    %724 = vmatprep.subr.bf16.mxu0 0
    %725 = vmatpush1.bf16.msra.mxu0 %v658
    %726 = vmatprep.subr.bf16.mxu0 0
    %727 = vmatpush1.bf16.msra.mxu0 %v659
    %728 = vmatprep.subr.bf16.mxu0 0
    %729 = vmatpush1.bf16.msra.mxu0 %v660
    %730 = vmatprep.subr.bf16.mxu0 0
    %731 = vmatpush1.bf16.msra.mxu0 %v661
    %732 = vmatprep.subr.bf16.mxu0 0
    %733 = vmatpush1.bf16.msra.mxu0 %v662
    %734 = vmatprep.subr.bf16.mxu0 0
    %735 = vmatpush1.bf16.msra.mxu0 %v663
    %736 = vmatprep.subr.bf16.mxu0 0
    %737 = vmatpush1.bf16.msra.mxu0 %v664
    %738 = vmatprep.subr.bf16.mxu0 0
    %739 = vmatpush1.bf16.msra.mxu0 %v665
    %740 = vmatprep.subr.bf16.mxu0 0
    %741 = vmatpush1.bf16.msra.mxu0 %v666
    %742 = vmatprep.subr.bf16.mxu0 0
    %743 = vmatpush1.bf16.msra.mxu0 %v667
    %744 = vmatprep.subr.bf16.mxu0 0
    %745 = vmatpush1.bf16.msra.mxu0 %v668
    %746 = vmatprep.subr.bf16.mxu0 0
    %747 = vmatpush1.bf16.msra.mxu0 %v669
    %748 = vmatprep.subr.bf16.mxu0 0
    %749 = vmatpush1.bf16.msra.mxu0 %v670
    %750 = vmatprep.subr.bf16.mxu0 0
    %751 = vmatpush1.bf16.msra.mxu0 %v671
    %752 = vmatprep.mubr.bf16.mxu0 %v455
    %753 = vmatmul.mubr.bf16.gmra.mrb[0].mxu0 %v454
    %v754 = vpop.f32.mrb[0].mxu0
    %v755 = vadd.f32 %v526, %v754
    %v756 = vpop.f32.mrb[0].mxu0
    %v757 = vpop.f32.mrb[0].mxu0
    %v758 = vpop.f32.mrb[0].mxu0
    %759 = vdwg.mxu0
    %760 = vmatprep.subr.bf16.mxu0 0
    %761 = vmatpush1.bf16.msra.mxu0 %v672
    %762 = vmatprep.subr.bf16.mxu0 0
    %763 = vmatpush1.bf16.msra.mxu0 %v673
    %764 = vmatprep.subr.bf16.mxu0 0
    %765 = vmatpush1.bf16.msra.mxu0 %v674
    %766 = vmatprep.subr.bf16.mxu0 0
    %767 = vmatpush1.bf16.msra.mxu0 %v675
    %768 = vmatprep.subr.bf16.mxu0 0
    %769 = vmatpush1.bf16.msra.mxu0 %v676
    %770 = vmatprep.subr.bf16.mxu0 0
    %771 = vmatpush1.bf16.msra.mxu0 %v677
    %772 = vmatprep.subr.bf16.mxu0 0
    %773 = vmatpush1.bf16.msra.mxu0 %v678
    %774 = vmatprep.subr.bf16.mxu0 0
    %775 = vmatpush1.bf16.msra.mxu0 %v679
    %776 = vmatprep.subr.bf16.mxu0 0
    %777 = vmatpush1.bf16.msra.mxu0 %v680
    %778 = vmatprep.subr.bf16.mxu0 0
    %779 = vmatpush1.bf16.msra.mxu0 %v681
    %780 = vmatprep.subr.bf16.mxu0 0
    %781 = vmatpush1.bf16.msra.mxu0 %v682
    %782 = vmatprep.subr.bf16.mxu0 0
    %783 = vmatpush1.bf16.msra.mxu0 %v683
    %784 = vmatprep.subr.bf16.mxu0 0
    %785 = vmatpush1.bf16.msra.mxu0 %v684
    %786 = vmatprep.subr.bf16.mxu0 0
    %787 = vmatpush1.bf16.msra.mxu0 %v685
    %788 = vmatprep.subr.bf16.mxu0 0
    %789 = vmatpush1.bf16.msra.mxu0 %v686
    %790 = vmatprep.subr.bf16.mxu0 0
    %791 = vmatpush1.bf16.msra.mxu0 %v687
    %792 = vmatprep.mubr.bf16.mxu0 %v456
    %793 = vmatmul.mubr.bf16.gmra.mrb[0].mxu0 %v456
    %v794 = vpop.f32.mrb[0].mxu0
    %v795 = vadd.f32 %v755, %v794
    %v796 = vpop.f32.mrb[0].mxu0
    %v797 = vpop.f32.mrb[0].mxu0
    %v798 = vpop.f32.mrb[0].mxu0
    %799 = vdwg.mxu0
    %800 = vst [vmem:[#allocation8] sm:$0xff] %v795
    %801 = vst [vmem:[#allocation9] sm:$0xff] %v432
    // Predicated region
    $region34: #{tpu_custom_call.1} parent=1 // pred_check
      _
    $region35: #{tpu_custom_call.1} parent=1 // pred_check_branch
      %803 = sbr.rel (0) target = $region37
    $region36: #{tpu_custom_call.1} parent=1 // pred_region
      %s805 = ssub.s32 128, 128
      %806 = vsyncadd [#allocation4], %s805
      %s808 = sshll.u32 [#allocation8], 4
      %s809 = int_to_ptr.vmem [resolvable:$true] %s808
      %811 = dma.vmem_to_hbm [thread:$0]  %s809, 128, %s5, [#allocation4]
    $region37: #{tpu_custom_call.1} parent=1 // pred_fallthru
      _
    // Predicated region
    $region38: #{tpu_custom_call.1} parent=1 // pred_check
      _
    $region39: #{tpu_custom_call.1} parent=1 // pred_check_branch
      %813 = sbr.rel (0) target = $region41
    $region40: #{tpu_custom_call.1} parent=1 // pred_region
      %s815 = ssub.s32 128, 128
      %816 = vsyncadd [#allocation10], %s815
      %s818 = sshll.u32 [#allocation9], 4
      %s819 = int_to_ptr.vmem [resolvable:$true] %s818
      %821 = dma.vmem_to_hbm [thread:$0]  %s819, 128, %s6, [#allocation10]
    $region41: #{tpu_custom_call.1} parent=1 // pred_fallthru
      _
    // Predicated region
    $region42: #{tpu_custom_call.1} parent=1 // pred_check
      _
    $region43: #{tpu_custom_call.1} parent=1 // pred_check_branch
      %823 = sbr.rel (0) target = $region45
    $region44: #{tpu_custom_call.1} parent=1 // pred_region
      %824 = dma.done [#allocation4], 128
    $region45: #{tpu_custom_call.1} parent=1 // pred_fallthru
      _
    // Predicated region
    $region46: #{tpu_custom_call.1} parent=1 // pred_check
      _
    $region47: #{tpu_custom_call.1} parent=1 // pred_check_branch
      %826 = sbr.rel (0) target = $region49
    $region48: #{tpu_custom_call.1} parent=1 // pred_region
      %827 = dma.done [#allocation10], 128
    $region49: #{tpu_custom_call.1} parent=1 // pred_fallthru
      _
    %828 = vsyncpa [#allocation3], 1
    %829 = vsyncpa [#allocation6], 1
    %830 = vsyncpa [#allocation4], 1
    %831 = vsyncpa [#allocation10], 1

</llo_original>
